<compile_context>
chip_gen: v5e
topology: v5e:2x2
jax: 0.10.0
libtpu: 0.0.40
codegen_flags: <defaults>
</compile_context>

<pallas_src>
import functools

import jax
import jax.numpy as jnp
from jax import lax
from jax.experimental import pallas as pl
from jax.experimental.pallas import tpu as pltpu

BN_EPS = 1e-5          # nn.BatchNorm2d default eps
LEAKY_SLOPE = 0.01     # nn.LeakyReLU default negative_slope


# ----------------------------- Pallas kernels ------------------------------ #
def _conv_stats_kernel(a_ref, w_ref, b_ref, g_ref, y_ref, ps_ref, pq_ref):
    """One M-tile of the im2col'd complex transposed conv + BN partial stats.

    a_ref : [TM, Kc]  bf16   im2col patches (phase decomposition, no stuffed zeros)
    w_ref : [Kc, Co]  bf16   macro weight (complex-combined)
    b_ref : [1,  Co]  f32    complex-combined bias, tiled over the s*s phases
    g_ref : [Co, C2]  f32    0/1 phase->real-channel pooling matrix
    y_ref : [TM, Co]  f32    un-normalized conv output tile
    ps_ref: [1,1,C2]  f32    per-tile sum   per real output channel
    pq_ref: [1,1,C2]  f32    per-tile sumsq per real output channel
    """
    y = jnp.dot(a_ref[...], w_ref[...], preferred_element_type=jnp.float32)
    y = y + b_ref[...]
    y_ref[...] = y

    col_sum = jnp.sum(y, axis=0, keepdims=True)            # [1, Co]
    col_sq = jnp.sum(y * y, axis=0, keepdims=True)         # [1, Co]
    ps_ref[...] = jnp.dot(col_sum, g_ref[...],
                          preferred_element_type=jnp.float32).reshape(ps_ref.shape)
    pq_ref[...] = jnp.dot(col_sq, g_ref[...],
                          preferred_element_type=jnp.float32).reshape(pq_ref.shape)


def _conv_phase_mag_kernel(a_ref, w_ref, b_ref, y_ref):
    """Last layer: conv + (elementwise) phase * tanh(magnitude) activation."""
    y = jnp.dot(a_ref[...], w_ref[...], preferred_element_type=jnp.float32)
    y = y + b_ref[...]
    mag = jnp.abs(y)
    # divide -> EUP reciprocal (separate bundle slot, essentially free)
    y_ref[...] = y * pl.reciprocal(mag + 1e-8, approx=True) * jnp.tanh(mag)


def _bn_act_kernel(y_ref, ps_ref, pq_ref, gt_ref, o_ref, *, inv_count):
    """Finalize BatchNorm (batch stats, gamma=1/beta=0) + LeakyReLU on one tile.

    y_ref : [TM, Co]   f32  conv output tile
    ps_ref: [T, 1, C2] f32  per-tile sums   (whole array, tiny)
    pq_ref: [T, 1, C2] f32  per-tile sumsqs (whole array, tiny)
    gt_ref: [C2, Co]   f32  0/1 real-channel -> phase-channel broadcast matrix
    """
    s_tot = jnp.sum(ps_ref[...], axis=0)                   # [1, C2]
    q_tot = jnp.sum(pq_ref[...], axis=0)                   # [1, C2]
    mean = s_tot * inv_count
    var = q_tot * inv_count - mean * mean                  # one-pass E[x^2]-E[x]^2 (f32)
    scale = lax.rsqrt(var + BN_EPS)
    mean_w = jnp.dot(mean, gt_ref[...], preferred_element_type=jnp.float32)    # [1, Co]
    scale_w = jnp.dot(scale, gt_ref[...], preferred_element_type=jnp.float32)  # [1, Co]
    normed = (y_ref[...] - mean_w) * scale_w
    o_ref[...] = jnp.where(normed >= 0, normed, LEAKY_SLOPE * normed)


# ------------------------------- wrapper ----------------------------------- #
def _pick_tile_m(m, target):
    """Largest divisor of m that is a multiple of 8 and <= target (else m)."""
    if m <= target or m % 8 != 0:
        return m
    for t in range(min(target, m), 7, -1):
        if m % t == 0 and t % 8 == 0:
            return t
    return m


@functools.partial(jax.jit, static_argnames=("stride", "padding", "out_padding",
                                              "last_layer", "tile_m"))
def decoder_forward(x, params, *, stride, padding, out_padding, last_layer,
                    tile_m=1024):
    """x: [N, Cin, H, W, 2] float32 (PyTorch layout). Returns [N, Cout, Ho, Wo, 2]."""
    w_r, w_i, b_r, b_i = params            # w: [Cin, Cout, K, K], b: [Cout]
    Cin, Cout, K, _ = w_r.shape
    N, _, H, W, _ = x.shape
    s, p, op = stride, padding, out_padding
    assert K - 1 - p >= 0, "requires padding <= kernel_size - 1"
    assert 0 <= op < s, "requires output_padding < stride"

    Ho = (H - 1) * s - 2 * p + K + op
    Wo = (W - 1) * s - 2 * p + K + op
    Uh = -(-Ho // s)                        # macro rows  (one per s output rows)
    Uw = -(-Wo // s)

    C2 = 2 * Cout
    Ci2 = 2 * Cin

    # macro ("phase") decomposition of the transposed conv
    d_lo = -((s - 1 + p) // s)
    d_hi = (K - 1 - p) // s
    Km = d_hi - d_lo + 1                    # macro taps per spatial dim
    Kc = Km * Km * Ci2                      # contraction depth
    Co = s * s * C2                         # phase-expanded output channels

    # ---- complex-combined per-tap weight [K, K, 2Cin, 2Cout] (no flip) ----
    wr = jnp.transpose(w_r, (2, 3, 0, 1))
    wi = jnp.transpose(w_i, (2, 3, 0, 1))
    top = jnp.concatenate([wr, wi], axis=-1)        # from x_real
    bot = jnp.concatenate([-wi, wr], axis=-1)       # from x_imag
    w_blk = jnp.concatenate([top, bot], axis=2)     # [K,K,2Cin,2Cout]

    # ---- macro weight [Km,Km,2Cin,s,s,2Cout] -> [Kc, Co] ----
    wm = jnp.zeros((Km, Km, Ci2, s, s, C2), jnp.float32)
    for dyi in range(Km):
        for ry in range(s):
            ky = (d_lo + dyi) * s + ry + p
            if not (0 <= ky < K):
                continue
            for dxi in range(Km):
                for rx in range(s):
                    kx = (d_lo + dxi) * s + rx + p
                    if 0 <= kx < K:
                        wm = wm.at[dyi, dxi, :, ry, rx, :].set(w_blk[ky, kx])
    w_mat = wm.reshape(Kc, Co).astype(jnp.bfloat16)

    # bias and phase pooling / broadcast matrices (tiny constants)
    b_cat = jnp.concatenate([b_r - b_i, b_r + b_i])                       # [2Cout]
    b_wide = jnp.tile(b_cat, s * s).reshape(1, Co).astype(jnp.float32)    # [1, Co]
    g_pool = jnp.tile(jnp.eye(C2, dtype=jnp.float32), (s * s, 1))         # [Co, C2]
    g_bcast = g_pool.T                                                    # [C2, Co]

    # ---- glue: layout + im2col of the ORIGINAL x (no zero stuffing) ----
    x_r = jnp.transpose(x[..., 0], (0, 2, 3, 1))
    x_i = jnp.transpose(x[..., 1], (0, 2, 3, 1))
    x_cat = jnp.concatenate([x_r, x_i], axis=-1)                          # [N,H,W,2Cin]

    pad_t = max(0, d_hi)
    pad_b = max(0, Uh - d_lo - H)
    pad_l = max(0, d_hi)
    pad_r = max(0, Uw - d_lo - W)
    xp = jnp.pad(x_cat, ((0, 0), (pad_t, pad_b), (pad_l, pad_r), (0, 0)))

    taps = []
    for dyi in range(Km):
        oy0 = pad_t - (d_lo + dyi)
        for dxi in range(Km):
            ox0 = pad_l - (d_lo + dxi)
            taps.append(xp[:, oy0:oy0 + Uh, ox0:ox0 + Uw, :])
    patches = jnp.concatenate(taps, axis=-1)                              # [N,Uh,Uw,Kc]
    M = N * Uh * Uw
    a_mat = patches.reshape(M, Kc).astype(jnp.bfloat16)

    tm = _pick_tile_m(M, tile_m)
    T = M // tm
    grid = (T,)
    cparams = pltpu.CompilerParams(dimension_semantics=("parallel",))

    a_spec = pl.BlockSpec((tm, Kc), lambda i: (i, 0))
    w_spec = pl.BlockSpec((Kc, Co), lambda i: (0, 0))
    b_spec = pl.BlockSpec((1, Co), lambda i: (0, 0))
    y_spec = pl.BlockSpec((tm, Co), lambda i: (i, 0))
    # TODO(synk): for very small Co the vector stores are lane-masked; a
    # lanes-merged [rows, Uw*Co] presentation (or channel padding to 128) would
    # densify them at the cost of an in-kernel relayout.

    if last_layer:
        y = pl.pallas_call(
            _conv_phase_mag_kernel,
            grid=grid,
            in_specs=[a_spec, w_spec, b_spec],
            out_specs=y_spec,
            out_shape=jax.ShapeDtypeStruct((M, Co), jnp.float32),
            compiler_params=cparams,
        )(a_mat, w_mat, b_wide)
    else:
        # BN statistics are over real output positions; require no cropped
        # macro rows/cols so the counts line up exactly.
        assert Ho % s == 0 and Wo % s == 0, \
            "BN path requires Ho, Wo divisible by stride"
        # TODO(synk): mask cropped macro positions out of the BN statistics to
        # support Ho/Wo not divisible by the stride.
        g_spec = pl.BlockSpec((Co, C2), lambda i: (0, 0))
        pt_spec = pl.BlockSpec((1, 1, C2), lambda i: (i, 0, 0))
        conv, psum, psq = pl.pallas_call(
            _conv_stats_kernel,
            grid=grid,
            in_specs=[a_spec, w_spec, b_spec, g_spec],
            out_specs=(y_spec, pt_spec, pt_spec),
            out_shape=(jax.ShapeDtypeStruct((M, Co), jnp.float32),
                       jax.ShapeDtypeStruct((T, 1, C2), jnp.float32),
                       jax.ShapeDtypeStruct((T, 1, C2), jnp.float32)),
            compiler_params=cparams,
        )(a_mat, w_mat, b_wide, g_pool)

        inv_count = 1.0 / float(N * Ho * Wo)
        ps_spec = pl.BlockSpec((T, 1, C2), lambda i: (0, 0, 0))
        gt_spec = pl.BlockSpec((C2, Co), lambda i: (0, 0))
        y = pl.pallas_call(
            functools.partial(_bn_act_kernel, inv_count=inv_count),
            grid=grid,
            in_specs=[y_spec, ps_spec, ps_spec, gt_spec],
            out_specs=y_spec,
            out_shape=jax.ShapeDtypeStruct((M, Co), jnp.float32),
            compiler_params=cparams,
        )(conv, psum, psq, g_bcast)

    # ---- glue: pixel shuffle + crop back to PyTorch layout [N,Cout,Ho,Wo,2] ----
    y = y.reshape(N, Uh, Uw, s, s, C2)
    y = jnp.transpose(y, (0, 1, 3, 2, 4, 5)).reshape(N, Uh * s, Uw * s, C2)
    y = y[:, :Ho, :Wo, :]
    out_r = jnp.transpose(y[..., :Cout], (0, 3, 1, 2))
    out_i = jnp.transpose(y[..., Cout:], (0, 3, 1, 2))
    return jnp.stack([out_r, out_i], axis=-1)


# --------------------------- pure-JAX reference ---------------------------- #
def _ref_convt2d(x, w, b, s, p, op):
    # x: [N,Cin,H,W]; w: [Cin,Cout,K,K] (torch ConvTranspose2d layout); b: [Cout]
    K = w.shape[-1]
    w_conv = jnp.transpose(w[:, :, ::-1, ::-1], (1, 0, 2, 3))  # OIHW
    pad = K - 1 - p
    y = lax.conv_general_dilated(
        x, w_conv, window_strides=(1, 1),
        padding=((pad, pad + op), (pad, pad + op)),
        lhs_dilation=(s, s),
        dimension_numbers=("NCHW", "OIHW", "NCHW"))
    return y + b[None, :, None, None]


def _ref_decoder(x, w_r, w_i, b_r, b_i, s, p, op, last_layer):
    xr, xi = x[..., 0], x[..., 1]
    c_real = _ref_convt2d(xr, w_r, b_r, s, p, op) - _ref_convt2d(xi, w_i, b_i, s, p, op)
    c_imag = _ref_convt2d(xr, w_i, b_i, s, p, op) + _ref_convt2d(xi, w_r, b_r, s, p, op)
    conved = jnp.stack([c_real, c_imag], axis=-1)
    if last_layer:
        mag = jnp.abs(conved)
        return conved / (mag + 1e-8) * jnp.tanh(mag)

    def bn(z):  # z: [N,C,H,W]
        mean = jnp.mean(z, axis=(0, 2, 3), keepdims=True)
        var = jnp.mean((z - mean) ** 2, axis=(0, 2, 3), keepdims=True)
        return (z - mean) / jnp.sqrt(var + BN_EPS)

    normed = jnp.stack([bn(conved[..., 0]), bn(conved[..., 1])], axis=-1)
    return jnp.where(normed >= 0, normed, LEAKY_SLOPE * normed)


# ---------------------------------- main ----------------------------------- #
if __name__ == "__main__":
    key = jax.random.PRNGKey(0)
    N, Cin, Cout, H, W = 2, 4, 4, 16, 16
    K, s, p, op = 3, 2, 1, 1

    k1, k2, k3, k4, k5 = jax.random.split(key, 5)
    bound = (6.0 / (Cin * K * K + Cout * K * K)) ** 0.5       # xavier_uniform bound
    w_r = jax.random.uniform(k1, (Cin, Cout, K, K), jnp.float32, -bound, bound)
    w_i = jax.random.uniform(k2, (Cin, Cout, K, K), jnp.float32, -bound, bound)
    bb = 1.0 / (Cin * K * K) ** 0.5                           # default conv bias bound
    b_r = jax.random.uniform(k3, (Cout,), jnp.float32, -bb, bb)
    b_i = jax.random.uniform(k4, (Cout,), jnp.float32, -bb, bb)
    x = jax.random.normal(k5, (N, Cin, H, W, 2), jnp.float32)
    params = (w_r, w_i, b_r, b_i)

    # intermediate decoder layer (conv + complex BN + LeakyReLU)
    out = decoder_forward(x, params, stride=s, padding=p, out_padding=op,
                          last_layer=False, tile_m=128)
    out = jax.block_until_ready(out)
    ref = jax.block_until_ready(_ref_decoder(x, w_r, w_i, b_r, b_i, s, p, op, False))
    assert out.shape == ref.shape == (N, Cout, 32, 32, 2)
    assert bool(jnp.allclose(out, ref, atol=2e-2, rtol=2e-2)), "mismatch (BN path)"

    # last decoder layer (conv + phase/magnitude activation)
    out2 = decoder_forward(x, params, stride=s, padding=p, out_padding=op,
                           last_layer=True, tile_m=128)
    out2 = jax.block_until_ready(out2)
    ref2 = jax.block_until_ready(_ref_decoder(x, w_r, w_i, b_r, b_i, s, p, op, True))
    assert bool(jnp.allclose(out2, ref2, atol=2e-2, rtol=2e-2)), "mismatch (last-layer path)"

    print("KERNEL_OK")
</pallas_src>

<mosaic_0001>
module attributes {stable_mosaic.version = 11 : i64} {
  func.func @_conv_stats_kernel(%arg0: i32, %arg1: memref<128x32xbf16, #tpu.memory_space<vmem>>, %arg2: memref<32x32xbf16, #tpu.memory_space<vmem>>, %arg3: memref<1x32xf32, #tpu.memory_space<vmem>>, %arg4: memref<32x8xf32, #tpu.memory_space<vmem>>, %arg5: memref<128x32xf32, #tpu.memory_space<vmem>>, %arg6: memref<1x1x8xf32, #tpu.memory_space<vmem>>, %arg7: memref<1x1x8xf32, #tpu.memory_space<vmem>>) attributes {dimension_semantics = [#tpu.dimension_semantics<parallel>], iteration_bounds = array<i64: 4>, scalar_prefetch = 0 : i64, scratch_operands = 0 : i64, tpu.core_type = #tpu.core_type<tc>, window_params = [{transform_indices = @transform_0, window_bounds = array<i64: 128, 32>}, {pipeline_mode = #tpu.pipeline_mode<synchronous>, transform_indices = @transform_1, window_bounds = array<i64: 32, 32>}, {pipeline_mode = #tpu.pipeline_mode<synchronous>, transform_indices = @transform_2, window_bounds = array<i64: 1, 32>}, {pipeline_mode = #tpu.pipeline_mode<synchronous>, transform_indices = @transform_3, window_bounds = array<i64: 32, 8>}, {transform_indices = @transform_4, window_bounds = array<i64: 128, 32>}, {transform_indices = @transform_5, window_bounds = array<i64: 1, 1, 8>}, {transform_indices = @transform_6, window_bounds = array<i64: 1, 1, 8>}]} {
    %c0 = arith.constant 0 : index
    %c0_0 = arith.constant 0 : index
    %0 = vector.load %arg1[%c0, %c0_0] : memref<128x32xbf16, #tpu.memory_space<vmem>>, vector<128x32xbf16>
    %c0_1 = arith.constant 0 : index
    %c0_2 = arith.constant 0 : index
    %1 = vector.load %arg2[%c0_1, %c0_2] : memref<32x32xbf16, #tpu.memory_space<vmem>>, vector<32x32xbf16>
    %cst = arith.constant dense<0.000000e+00> : vector<128x32xf32>
    %2 = tpu.matmul %0, %1, %cst {dimension_numbers = #tpu.dot_dimension_numbers<[1], [0], [0], [1], [0, 0, 1, 1], [], []>} : vector<128x32xbf16>, vector<32x32xbf16>, vector<128x32xf32> -> vector<128x32xf32>
    %c0_3 = arith.constant 0 : index
    %c0_4 = arith.constant 0 : index
    %3 = vector.load %arg3[%c0_3, %c0_4] : memref<1x32xf32, #tpu.memory_space<vmem>>, vector<1x32xf32>
    %4 = vector.broadcast %3 : vector<1x32xf32> to vector<128x32xf32>
    %5 = arith.addf %2, %4 : vector<128x32xf32>
    %c0_5 = arith.constant 0 : index
    %c0_6 = arith.constant 0 : index
    %6 = vector.load %arg5[%c0_5, %c0_6] : memref<128x32xf32, #tpu.memory_space<vmem>>, vector<128x32xf32>
    tpu.vector_store %arg5[%c0_5, %c0_6], %5 {strides = array<i32>} : memref<128x32xf32, #tpu.memory_space<vmem>>, vector<128x32xf32>,
    %cst_7 = arith.constant dense<0.000000e+00> : vector<32xf32>
    %7 = vector.multi_reduction <add>, %5, %cst_7 [0] : vector<128x32xf32> to vector<32xf32>
    %8 = vector.shape_cast %7 : vector<32xf32> to vector<1x32xf32>
    %9 = arith.mulf %5, %5 : vector<128x32xf32>
    %cst_8 = arith.constant dense<0.000000e+00> : vector<32xf32>
    %10 = vector.multi_reduction <add>, %9, %cst_8 [0] : vector<128x32xf32> to vector<32xf32>
    %11 = vector.shape_cast %10 : vector<32xf32> to vector<1x32xf32>
    %c0_9 = arith.constant 0 : index
    %c0_10 = arith.constant 0 : index
    %12 = vector.load %arg4[%c0_9, %c0_10] : memref<32x8xf32, #tpu.memory_space<vmem>>, vector<32x8xf32>
    %cst_11 = arith.constant dense<0.000000e+00> : vector<1x8xf32>
    %13 = tpu.matmul %8, %12, %cst_11 {dimension_numbers = #tpu.dot_dimension_numbers<[1], [0], [0], [1], [0, 0, 1, 1], [], []>} : vector<1x32xf32>, vector<32x8xf32>, vector<1x8xf32> -> vector<1x8xf32>
    %14 = vector.shape_cast %13 : vector<1x8xf32> to vector<1x1x8xf32>
    %c0_12 = arith.constant 0 : index
    %c0_13 = arith.constant 0 : index
    %c0_14 = arith.constant 0 : index
    %15 = vector.load %arg6[%c0_12, %c0_13, %c0_14] : memref<1x1x8xf32, #tpu.memory_space<vmem>>, vector<1x1x8xf32>
    tpu.vector_store %arg6[%c0_12, %c0_13, %c0_14], %14 {strides = array<i32>} : memref<1x1x8xf32, #tpu.memory_space<vmem>>, vector<1x1x8xf32>,
    %c0_15 = arith.constant 0 : index
    %c0_16 = arith.constant 0 : index
    %16 = vector.load %arg4[%c0_15, %c0_16] : memref<32x8xf32, #tpu.memory_space<vmem>>, vector<32x8xf32>
    %cst_17 = arith.constant dense<0.000000e+00> : vector<1x8xf32>
    %17 = tpu.matmul %11, %16, %cst_17 {dimension_numbers = #tpu.dot_dimension_numbers<[1], [0], [0], [1], [0, 0, 1, 1], [], []>} : vector<1x32xf32>, vector<32x8xf32>, vector<1x8xf32> -> vector<1x8xf32>
    %18 = vector.shape_cast %17 : vector<1x8xf32> to vector<1x1x8xf32>
    %c0_18 = arith.constant 0 : index
    %c0_19 = arith.constant 0 : index
    %c0_20 = arith.constant 0 : index
    %19 = vector.load %arg7[%c0_18, %c0_19, %c0_20] : memref<1x1x8xf32, #tpu.memory_space<vmem>>, vector<1x1x8xf32>
    tpu.vector_store %arg7[%c0_18, %c0_19, %c0_20], %18 {strides = array<i32>} : memref<1x1x8xf32, #tpu.memory_space<vmem>>, vector<1x1x8xf32>,
    return
  }
  func.func @transform_0(%arg0: i32) -> (i32, i32) {
    %c0_i32 = arith.constant 0 : i32
    %c0_i32_0 = arith.constant 0 : i32
    return %arg0, %c0_i32 : i32, i32
  }
  func.func @transform_1(%arg0: i32) -> (i32, i32) {
    %c0_i32 = arith.constant 0 : i32
    %c0_i32_0 = arith.constant 0 : i32
    %c0_i32_1 = arith.constant 0 : i32
    return %c0_i32, %c0_i32_0 : i32, i32
  }
  func.func @transform_2(%arg0: i32) -> (i32, i32) {
    %c0_i32 = arith.constant 0 : i32
    %c0_i32_0 = arith.constant 0 : i32
    %c0_i32_1 = arith.constant 0 : i32
    return %c0_i32, %c0_i32_0 : i32, i32
  }
  func.func @transform_3(%arg0: i32) -> (i32, i32) {
    %c0_i32 = arith.constant 0 : i32
    %c0_i32_0 = arith.constant 0 : i32
    %c0_i32_1 = arith.constant 0 : i32
    return %c0_i32, %c0_i32_0 : i32, i32
  }
  func.func @transform_4(%arg0: i32) -> (i32, i32) {
    %c0_i32 = arith.constant 0 : i32
    %c0_i32_0 = arith.constant 0 : i32
    return %arg0, %c0_i32 : i32, i32
  }
  func.func @transform_5(%arg0: i32) -> (i32, i32, i32) {
    %c0_i32 = arith.constant 0 : i32
    %c0_i32_0 = arith.constant 0 : i32
    %c0_i32_1 = arith.constant 0 : i32
    return %arg0, %c0_i32, %c0_i32_0 : i32, i32, i32
  }
  func.func @transform_6(%arg0: i32) -> (i32, i32, i32) {
    %c0_i32 = arith.constant 0 : i32
    %c0_i32_0 = arith.constant 0 : i32
    %c0_i32_1 = arith.constant 0 : i32
    return %arg0, %c0_i32, %c0_i32_0 : i32, i32, i32
  }
}

module attributes {stable_mosaic.version = 11 : i64} {
  func.func @_bn_act_kernel(%arg0: i32, %arg1: memref<128x32xf32, #tpu.memory_space<vmem>>, %arg2: memref<4x1x8xf32, #tpu.memory_space<vmem>>, %arg3: memref<4x1x8xf32, #tpu.memory_space<vmem>>, %arg4: memref<8x32xf32, #tpu.memory_space<vmem>>, %arg5: memref<128x32xf32, #tpu.memory_space<vmem>>) attributes {dimension_semantics = [#tpu.dimension_semantics<parallel>], iteration_bounds = array<i64: 4>, scalar_prefetch = 0 : i64, scratch_operands = 0 : i64, tpu.core_type = #tpu.core_type<tc>, window_params = [{transform_indices = @transform_0, window_bounds = array<i64: 128, 32>}, {pipeline_mode = #tpu.pipeline_mode<synchronous>, transform_indices = @transform_1, window_bounds = array<i64: 4, 1, 8>}, {pipeline_mode = #tpu.pipeline_mode<synchronous>, transform_indices = @transform_2, window_bounds = array<i64: 4, 1, 8>}, {pipeline_mode = #tpu.pipeline_mode<synchronous>, transform_indices = @transform_3, window_bounds = array<i64: 8, 32>}, {transform_indices = @transform_4, window_bounds = array<i64: 128, 32>}]} {
    %c0 = arith.constant 0 : index
    %c0_0 = arith.constant 0 : index
    %c0_1 = arith.constant 0 : index
    %0 = vector.load %arg2[%c0, %c0_0, %c0_1] : memref<4x1x8xf32, #tpu.memory_space<vmem>>, vector<4x1x8xf32>
    %cst = arith.constant dense<0.000000e+00> : vector<1x8xf32>
    %1 = vector.multi_reduction <add>, %0, %cst [0] : vector<4x1x8xf32> to vector<1x8xf32>
    %c0_2 = arith.constant 0 : index
    %c0_3 = arith.constant 0 : index
    %c0_4 = arith.constant 0 : index
    %2 = vector.load %arg3[%c0_2, %c0_3, %c0_4] : memref<4x1x8xf32, #tpu.memory_space<vmem>>, vector<4x1x8xf32>
    %cst_5 = arith.constant dense<0.000000e+00> : vector<1x8xf32>
    %3 = vector.multi_reduction <add>, %2, %cst_5 [0] : vector<4x1x8xf32> to vector<1x8xf32>
    %cst_6 = arith.constant 4.8828125E-4 : f32
    %4 = vector.broadcast %cst_6 : f32 to vector<1x8xf32>
    %5 = arith.mulf %1, %4 : vector<1x8xf32>
    %cst_7 = arith.constant 4.8828125E-4 : f32
    %6 = vector.broadcast %cst_7 : f32 to vector<1x8xf32>
    %7 = arith.mulf %3, %6 : vector<1x8xf32>
    %8 = arith.mulf %5, %5 : vector<1x8xf32>
    %9 = arith.subf %7, %8 : vector<1x8xf32>
    %cst_8 = arith.constant 9.99999974E-6 : f32
    %10 = vector.broadcast %cst_8 : f32 to vector<1x8xf32>
    %11 = arith.addf %9, %10 : vector<1x8xf32>
    %12 = math.rsqrt %11 : vector<1x8xf32>
    %c0_9 = arith.constant 0 : index
    %c0_10 = arith.constant 0 : index
    %13 = vector.load %arg4[%c0_9, %c0_10] : memref<8x32xf32, #tpu.memory_space<vmem>>, vector<8x32xf32>
    %cst_11 = arith.constant dense<0.000000e+00> : vector<1x32xf32>
    %14 = tpu.matmul %5, %13, %cst_11 {dimension_numbers = #tpu.dot_dimension_numbers<[1], [0], [0], [1], [0, 0, 1, 1], [], []>} : vector<1x8xf32>, vector<8x32xf32>, vector<1x32xf32> -> vector<1x32xf32>
    %c0_12 = arith.constant 0 : index
    %c0_13 = arith.constant 0 : index
    %15 = vector.load %arg4[%c0_12, %c0_13] : memref<8x32xf32, #tpu.memory_space<vmem>>, vector<8x32xf32>
    %cst_14 = arith.constant dense<0.000000e+00> : vector<1x32xf32>
    %16 = tpu.matmul %12, %15, %cst_14 {dimension_numbers = #tpu.dot_dimension_numbers<[1], [0], [0], [1], [0, 0, 1, 1], [], []>} : vector<1x8xf32>, vector<8x32xf32>, vector<1x32xf32> -> vector<1x32xf32>
    %c0_15 = arith.constant 0 : index
    %c0_16 = arith.constant 0 : index
    %17 = vector.load %arg1[%c0_15, %c0_16] : memref<128x32xf32, #tpu.memory_space<vmem>>, vector<128x32xf32>
    %18 = vector.broadcast %14 : vector<1x32xf32> to vector<128x32xf32>
    %19 = arith.subf %17, %18 : vector<128x32xf32>
    %20 = vector.broadcast %16 : vector<1x32xf32> to vector<128x32xf32>
    %21 = arith.mulf %19, %20 : vector<128x32xf32>
    %cst_17 = arith.constant 0.000000e+00 : f32
    %22 = vector.broadcast %cst_17 : f32 to vector<128x32xf32>
    %23 = arith.cmpf oge, %21, %22 : vector<128x32xf32>
    %cst_18 = arith.constant 0.00999999977 : f32
    %24 = vector.broadcast %cst_18 : f32 to vector<128x32xf32>
    %25 = arith.mulf %24, %21 : vector<128x32xf32>
    %26 = arith.select %23, %21, %25 : vector<128x32xi1>, vector<128x32xf32>
    %c0_19 = arith.constant 0 : index
    %c0_20 = arith.constant 0 : index
    %27 = vector.load %arg5[%c0_19, %c0_20] : memref<128x32xf32, #tpu.memory_space<vmem>>, vector<128x32xf32>
    tpu.vector_store %arg5[%c0_19, %c0_20], %26 {strides = array<i32>} : memref<128x32xf32, #tpu.memory_space<vmem>>, vector<128x32xf32>,
    return
  }
  func.func @transform_0(%arg0: i32) -> (i32, i32) {
    %c0_i32 = arith.constant 0 : i32
    %c0_i32_0 = arith.constant 0 : i32
    return %arg0, %c0_i32 : i32, i32
  }
  func.func @transform_1(%arg0: i32) -> (i32, i32, i32) {
    %c0_i32 = arith.constant 0 : i32
    %c0_i32_0 = arith.constant 0 : i32
    %c0_i32_1 = arith.constant 0 : i32
    %c0_i32_2 = arith.constant 0 : i32
    return %c0_i32, %c0_i32_0, %c0_i32_1 : i32, i32, i32
  }
  func.func @transform_2(%arg0: i32) -> (i32, i32, i32) {
    %c0_i32 = arith.constant 0 : i32
    %c0_i32_0 = arith.constant 0 : i32
    %c0_i32_1 = arith.constant 0 : i32
    %c0_i32_2 = arith.constant 0 : i32
    return %c0_i32, %c0_i32_0, %c0_i32_1 : i32, i32, i32
  }
  func.func @transform_3(%arg0: i32) -> (i32, i32) {
    %c0_i32 = arith.constant 0 : i32
    %c0_i32_0 = arith.constant 0 : i32
    %c0_i32_1 = arith.constant 0 : i32
    return %c0_i32, %c0_i32_0 : i32, i32
  }
  func.func @transform_4(%arg0: i32) -> (i32, i32) {
    %c0_i32 = arith.constant 0 : i32
    %c0_i32_0 = arith.constant 0 : i32
    return %arg0, %c0_i32 : i32, i32
  }
}

</mosaic_0001>

<llo_original>
// kernel: tile.14
$region0: #{tile.14}
  %s0 = inlined_call_operand.vmem [shape: f32[4,8], index: 0, kind: input, shape index: {}]
  %s1 = inlined_call_operand.vmem [shape: f32[1,32], index: 1, kind: output, shape index: {}]
  $region1: #{tile.14} parent=0
    #allocation0 [shape = 'u8[4096]{0}', space=vmem, size = 0x1000, scoped, tag = 'scoped mem for output reshape']
    #allocation1 [shape = 'u8[4096]{0}', space=vmem, size = 0x1000, scoped, tag = 'scoped mem for input reshape']
    %s3 = ssub.s32 16, 1
    %v4 = vld [vmem:[%s0] sm:%s3]
    %5 = vst [vmem:[#allocation1] sm:%s3] %v4
    %v6 = vld [vmem:[#allocation1] sm:$0x1]
    %vm7 = vcmask 64512
    %8 = vst.msk [vmem:[#allocation0] sm:$0x1] %vm7, %v6
    %s9 = scalar_lea.vmem [#allocation1], 3
    %v10 = vld [vmem:[%s9] sm:$0x1]
    %11 = vrot.lane.b32.xlu0 %v10, 24
    %v12 = vpop.permute.xlu0 %11
    %vm13 = vcmask 261312
    %14 = vst.msk [vmem:[#allocation0] sm:$0x1] %vm13, %v12
    %s15 = scalar_lea.vmem [#allocation1], 2
    %v16 = vld [vmem:[%s15] sm:$0x1]
    %17 = vrot.lane.b32.xlu0 %v16, 16
    %v18 = vpop.permute.xlu0 %17
    %vm19 = vcmask 195712
    %20 = vst.msk [vmem:[#allocation0] sm:$0x1] %vm19, %v18
    %s21 = scalar_lea.vmem [#allocation1], 1
    %v22 = vld [vmem:[%s21] sm:$0x1]
    %23 = vrot.lane.b32.xlu0 %v22, 8
    %v24 = vpop.permute.xlu0 %23
    %vm25 = vcmask 130112
    %26 = vst.msk [vmem:[#allocation0] sm:$0x1] %vm25, %v24
    %s28 = ssub.s32 2, 1
    %v29 = vld [vmem:[#allocation0] sm:%s28]
    %s31 = ssub.s32 2, 1
    %32 = vst [vmem:[%s1] sm:%s31] %v29

// kernel: tile.13
$region0: #{tile.13}
  #allocation0 [shape = 's32[1]{0}', space=sflag, size = 0x4, scoped, tag = 'scoped memory for tile.13']
  %s0 = inlined_call_operand.vmem [shape: f32[8], index: 0, kind: input, shape index: {}]
  %s1 = inlined_call_operand.vmem [shape: f32[4,8], index: 1, kind: output, shape index: {}]
  // Predicated region
  $region2: #{tile.13} parent=0 // pred_check
    _
  $region3: #{tile.13} parent=0 // pred_check_branch
    %3 = sbr.rel (0) target = $region5
  $region4: #{tile.13} parent=0 // pred_region
    _
  $region5: #{tile.13} parent=0 // pred_fallthru
    _
  %v4 = vld [vmem:[%s0] ss:$0 sm:$0xff]
  %5 = vst [vmem:[%s1] sm:$0xf] %v4

// kernel: tile.19
$region0: #{tile.19}
  %s0 = inlined_call_operand.vmem [shape: f32[4,8,8], index: 0, kind: input, shape index: {}]
  %s1 = inlined_call_operand.vmem [shape: f32[32,8], index: 1, kind: output, shape index: {}]
  $region1: #{tile.19} parent=0
    #allocation0 [shape = 'u8[32768]{0}', space=vmem, size = 0x8000, scoped, tag = 'scoped mem for input reshape']
    %s3 = ssub.s32 16, 1
    %s4 = scalar_lea.vmem %s0, 28
    %v5 = vld [vmem:[%s4] sm:%s3]
    %s6 = scalar_lea.vmem [#allocation0], 56
    %7 = vst [vmem:[%s6] sm:%s3] %v5
    %s8 = scalar_lea.vmem %s0, 24
    %v9 = vld [vmem:[%s8] sm:%s3]
    %s10 = scalar_lea.vmem [#allocation0], 48
    %11 = vst [vmem:[%s10] sm:%s3] %v9
    %s12 = scalar_lea.vmem %s0, 20
    %v13 = vld [vmem:[%s12] sm:%s3]
    %s14 = scalar_lea.vmem [#allocation0], 40
    %15 = vst [vmem:[%s14] sm:%s3] %v13
    %s16 = scalar_lea.vmem %s0, 16
    %v17 = vld [vmem:[%s16] sm:%s3]
    %s18 = scalar_lea.vmem [#allocation0], 32
    %19 = vst [vmem:[%s18] sm:%s3] %v17
    %s20 = scalar_lea.vmem %s0, 12
    %v21 = vld [vmem:[%s20] sm:%s3]
    %s22 = scalar_lea.vmem [#allocation0], 24
    %23 = vst [vmem:[%s22] sm:%s3] %v21
    %s24 = scalar_lea.vmem %s0, 8
    %v25 = vld [vmem:[%s24] sm:%s3]
    %s26 = scalar_lea.vmem [#allocation0], 16
    %27 = vst [vmem:[%s26] sm:%s3] %v25
    %s28 = scalar_lea.vmem %s0, 4
    %v29 = vld [vmem:[%s28] sm:%s3]
    %s30 = scalar_lea.vmem [#allocation0], 8
    %31 = vst [vmem:[%s30] sm:%s3] %v29
    %v32 = vld [vmem:[%s0] sm:%s3]
    %33 = vst [vmem:[#allocation0] sm:%s3] %v32
    %v34 = vld [vmem:[#allocation0] ss:$8 sm:$0xf]
    %v35 = vld [vmem:[#allocation0] ss:$8 sm:$0xf0]
    %vm36 = vcmask 1047556
    %v37 = vsel %vm36, %v35, %v34
    %vm38 = vcmask 64512
    %39 = vst.msk [vmem:[%s1] sm:$0xff] %vm38, %v37
    %s40 = scalar_lea.vmem [#allocation0], 3
    %v41 = vld [vmem:[%s40] ss:$8 sm:$0xf]
    %s42 = scalar_lea.vmem [#allocation0], 3
    %v43 = vld [vmem:[%s42] ss:$8 sm:$0xf0]
    %vm44 = vcmask 1047556
    %v45 = vsel %vm44, %v43, %v41
    %46 = vrot.lane.b32.xlu0 %v45, 24
    %v47 = vpop.permute.xlu0 %46
    %vm48 = vcmask 261312
    %49 = vst.msk [vmem:[%s1] sm:$0xff] %vm48, %v47
    %s50 = scalar_lea.vmem [#allocation0], 2
    %v51 = vld [vmem:[%s50] ss:$8 sm:$0xf]
    %s52 = scalar_lea.vmem [#allocation0], 2
    %v53 = vld [vmem:[%s52] ss:$8 sm:$0xf0]
    %vm54 = vcmask 1047556
    %v55 = vsel %vm54, %v53, %v51
    %56 = vrot.lane.b32.xlu0 %v55, 16
    %v57 = vpop.permute.xlu0 %56
    %vm58 = vcmask 195712
    %59 = vst.msk [vmem:[%s1] sm:$0xff] %vm58, %v57
    %s60 = scalar_lea.vmem [#allocation0], 1
    %v61 = vld [vmem:[%s60] ss:$8 sm:$0xf]
    %s62 = scalar_lea.vmem [#allocation0], 1
    %v63 = vld [vmem:[%s62] ss:$8 sm:$0xf0]
    %vm64 = vcmask 1047556
    %v65 = vsel %vm64, %v63, %v61
    %66 = vrot.lane.b32.xlu0 %v65, 8
    %v67 = vpop.permute.xlu0 %66
    %vm68 = vcmask 130112
    %69 = vst.msk [vmem:[%s1] sm:$0xff] %vm68, %v67

// kernel: decoder_forward.2
$region0: #{decoder_forward.2}
  #allocation0 [shape = 'u32[]', space=smem, size = 0x4, offset = 0x4, fixed_abs, tag = 'smem constant byte address 0x4 - core index']
  #allocation1 [shape = 'u32[72,128]{1,0:T(1,128)}', space=vmem, size = 0x9000, scoped, tag = 'internal scratch']
  %s0 = inlined_call_operand.vmem [shape: bf16[512,32], index: 0, kind: input, shape index: {}]
  %s1 = inlined_call_operand.vmem [shape: bf16[32,32], index: 1, kind: input, shape index: {}]
  %s2 = inlined_call_operand.vmem [shape: f32[1,32], index: 2, kind: input, shape index: {}]
  %s3 = inlined_call_operand.vmem [shape: f32[32,8], index: 3, kind: input, shape index: {}]
  %s4 = inlined_call_operand.vmem [shape: f32[512,32], index: 4, kind: output, shape index: {0}]
  %s5 = inlined_call_operand.vmem [shape: f32[4,1,8], index: 5, kind: output, shape index: {1}]
  %s6 = inlined_call_operand.vmem [shape: f32[4,1,8], index: 6, kind: output, shape index: {2}]
  %7 = xla_tuple %s4, %s5, %s6
  %s8 = sld [smem:[#allocation0]]
  $region65: #{decoder_forward.2} parent=0
    _
  %s10 = ssub.s32 1, %s8
  %s11 = scalar_select 0, %s10, %s8
  loop: start=0, step=1, limit=6
  $region2: #{decoder_forward.2} parent=0 // loop_pre_header
    _
  $region3: #{decoder_forward.2} parent=0 // loop_header
    %s13 = sphi 0, %s17
    %p14 = scmp.ge.s32.totalorder %s13, 6
    %s23 = sphi 0, %s25
    %s26 = sphi 0, %s23
    %s27 = sphi 0, %s26
    %s43 = sphi 0, %s27
    %s47 = sphi 0, %s47
    %s49 = sphi 0, %s47
    %s50 = sphi 0, %s49
    %s64 = sphi 0, %s50
    %s68 = sphi 0, %s68
    %s70 = sphi 0, %s68
    %s71 = sphi 0, %s70
    %s85 = sphi 0, %s71
    %s89 = sphi 0, %s89
    %s91 = sphi 0, %s89
    %s92 = sphi 0, %s91
    %s106 = sphi 0, %s92
    %s112 = sphi 0, %s114
    %s115 = sphi 0, %s112
    %s116 = sphi 0, %s115
    %s132 = sphi 0, %s116
    %s138 = sphi 0, %s140
    %s141 = sphi 0, %s138
    %s142 = sphi 0, %s141
    %s158 = sphi 0, %s142
    %s164 = sphi 0, %s166
    %s167 = sphi 0, %s164
    %s168 = sphi 0, %s167
    %s184 = sphi 0, %s168
  $region4: #{decoder_forward.2} parent=0 // loop_header_branch
    %16 = sbr.rel (%p14) target = $region8
  $region5: #{decoder_forward.2} parent=0 // loop_body
    %s18 = ssub.s32 %s13, 1
    %s19 = ssub.s32 %s13, 2
    %s20 = sadd.s32 %s13, 1
    %s21 = ssub.s32 %s13, %s20
    %p22 = scmp.eq.s32.totalorder %s21, 0
    %s24 = sadd.s32 %s23, 1
    %s25 = scalar_select %p22, %s23, %s24
    %p28 = pneg %p22
    %p29 = scmp.eq.s32.totalorder %s13, 3
    %p30 = por %p28, %p29
    %p31 = scmp.ne.s32.totalorder %s23, %s26
    %p32 = scmp.eq.s32.totalorder %s13, 0
    %p33 = por %p31, %p32
    %p34 = scmp.ne.s32.totalorder %s23, %s26
    %p35 = scmp.eq.s32.totalorder %s18, 3
    %p36 = por %p34, %p35
    %p37 = scmp.ne.s32.totalorder %s26, %s27
    %p38 = scmp.eq.s32.totalorder %s18, 0
    %p39 = por %p37, %p38
    %p40 = scmp.ne.s32.totalorder %s26, %s27
    %p41 = scmp.eq.s32.totalorder %s19, 3
    %p42 = por %p40, %p41
    %p44 = scmp.ne.s32.totalorder %s27, %s43
    %p45 = scmp.eq.s32.totalorder %s19, 0
    %p46 = por %p44, %p45
    %s48 = sadd.s32 %s47, 1
    %p51 = scmp.eq.s32.totalorder %s13, 3
    %p52 = scmp.ne.s32.totalorder %s47, %s49
    %p53 = scmp.eq.s32.totalorder %s13, 0
    %p54 = por %p52, %p53
    %p55 = scmp.ne.s32.totalorder %s47, %s49
    %p56 = scmp.eq.s32.totalorder %s18, 3
    %p57 = por %p55, %p56
    %p58 = scmp.ne.s32.totalorder %s49, %s50
    %p59 = scmp.eq.s32.totalorder %s18, 0
    %p60 = por %p58, %p59
    %p61 = scmp.ne.s32.totalorder %s49, %s50
    %p62 = scmp.eq.s32.totalorder %s19, 3
    %p63 = por %p61, %p62
    %p65 = scmp.ne.s32.totalorder %s50, %s64
    %p66 = scmp.eq.s32.totalorder %s19, 0
    %p67 = por %p65, %p66
    %s69 = sadd.s32 %s68, 1
    %p72 = scmp.eq.s32.totalorder %s13, 3
    %p73 = scmp.ne.s32.totalorder %s68, %s70
    %p74 = scmp.eq.s32.totalorder %s13, 0
    %p75 = por %p73, %p74
    %p76 = scmp.ne.s32.totalorder %s68, %s70
    %p77 = scmp.eq.s32.totalorder %s18, 3
    %p78 = por %p76, %p77
    %p79 = scmp.ne.s32.totalorder %s70, %s71
    %p80 = scmp.eq.s32.totalorder %s18, 0
    %p81 = por %p79, %p80
    %p82 = scmp.ne.s32.totalorder %s70, %s71
    %p83 = scmp.eq.s32.totalorder %s19, 3
    %p84 = por %p82, %p83
    %p86 = scmp.ne.s32.totalorder %s71, %s85
    %p87 = scmp.eq.s32.totalorder %s19, 0
    %p88 = por %p86, %p87
    %s90 = sadd.s32 %s89, 1
    %p93 = scmp.eq.s32.totalorder %s13, 3
    %p94 = scmp.ne.s32.totalorder %s89, %s91
    %p95 = scmp.eq.s32.totalorder %s13, 0
    %p96 = por %p94, %p95
    %p97 = scmp.ne.s32.totalorder %s89, %s91
    %p98 = scmp.eq.s32.totalorder %s18, 3
    %p99 = por %p97, %p98
    %p100 = scmp.ne.s32.totalorder %s91, %s92
    %p101 = scmp.eq.s32.totalorder %s18, 0
    %p102 = por %p100, %p101
    %p103 = scmp.ne.s32.totalorder %s91, %s92
    %p104 = scmp.eq.s32.totalorder %s19, 3
    %p105 = por %p103, %p104
    %p107 = scmp.ne.s32.totalorder %s92, %s106
    %p108 = scmp.eq.s32.totalorder %s19, 0
    %p109 = por %p107, %p108
    %s110 = ssub.s32 %s13, %s20
    %p111 = scmp.eq.s32.totalorder %s110, 0
    %s113 = sadd.s32 %s112, 1
    %s114 = scalar_select %p111, %s112, %s113
    %p117 = pneg %p111
    %p118 = scmp.eq.s32.totalorder %s13, 3
    %p119 = por %p117, %p118
    %p120 = scmp.ne.s32.totalorder %s112, %s115
    %p121 = scmp.eq.s32.totalorder %s13, 0
    %p122 = por %p120, %p121
    %p123 = scmp.ne.s32.totalorder %s112, %s115
    %p124 = scmp.eq.s32.totalorder %s18, 3
    %p125 = por %p123, %p124
    %p126 = scmp.ne.s32.totalorder %s115, %s116
    %p127 = scmp.eq.s32.totalorder %s18, 0
    %p128 = por %p126, %p127
    %p129 = scmp.ne.s32.totalorder %s115, %s116
    %p130 = scmp.eq.s32.totalorder %s19, 3
    %p131 = por %p129, %p130
    %p133 = scmp.ne.s32.totalorder %s116, %s132
    %p134 = scmp.eq.s32.totalorder %s19, 0
    %p135 = por %p133, %p134
    %s136 = ssub.s32 %s13, %s20
    %p137 = scmp.eq.s32.totalorder %s136, 0
    %s139 = sadd.s32 %s138, 1
    %s140 = scalar_select %p137, %s138, %s139
    %p143 = pneg %p137
    %p144 = scmp.eq.s32.totalorder %s13, 3
    %p145 = por %p143, %p144
    %p146 = scmp.ne.s32.totalorder %s138, %s141
    %p147 = scmp.eq.s32.totalorder %s13, 0
    %p148 = por %p146, %p147
    %p149 = scmp.ne.s32.totalorder %s138, %s141
    %p150 = scmp.eq.s32.totalorder %s18, 3
    %p151 = por %p149, %p150
    %p152 = scmp.ne.s32.totalorder %s141, %s142
    %p153 = scmp.eq.s32.totalorder %s18, 0
    %p154 = por %p152, %p153
    %p155 = scmp.ne.s32.totalorder %s141, %s142
    %p156 = scmp.eq.s32.totalorder %s19, 3
    %p157 = por %p155, %p156
    %p159 = scmp.ne.s32.totalorder %s142, %s158
    %p160 = scmp.eq.s32.totalorder %s19, 0
    %p161 = por %p159, %p160
    %s162 = ssub.s32 %s13, %s20
    %p163 = scmp.eq.s32.totalorder %s162, 0
    %s165 = sadd.s32 %s164, 1
    %s166 = scalar_select %p163, %s164, %s165
    %p169 = pneg %p163
    %p170 = scmp.eq.s32.totalorder %s13, 3
    %p171 = por %p169, %p170
    %p172 = scmp.ne.s32.totalorder %s164, %s167
    %p173 = scmp.eq.s32.totalorder %s13, 0
    %p174 = por %p172, %p173
    %p175 = scmp.ne.s32.totalorder %s164, %s167
    %p176 = scmp.eq.s32.totalorder %s18, 3
    %p177 = por %p175, %p176
    %p178 = scmp.ne.s32.totalorder %s167, %s168
    %p179 = scmp.eq.s32.totalorder %s18, 0
    %p180 = por %p178, %p179
    %p181 = scmp.ne.s32.totalorder %s167, %s168
    %p182 = scmp.eq.s32.totalorder %s19, 3
    %p183 = por %p181, %p182
    %p185 = scmp.ne.s32.totalorder %s168, %s184
    %p186 = scmp.eq.s32.totalorder %s19, 0
    %p187 = por %p185, %p186
    %p188 = scmp.le.s32.totalorder 1, %s13
    %p189 = scmp.lt.s32.totalorder %s13, 5
    %p190 = pnand %p188, %p189
    %p191 = pneg %p190
    // Predicated region
    $region9: #{decoder_forward.2} parent=5 // pred_check
      _
    $region10: #{decoder_forward.2} parent=5 // pred_check_branch
      %193 = sbr.rel (%p190) target = $region12
    $region11: #{decoder_forward.2} parent=5 // pred_region
      %s194 = ssub.s32 %s13, 1
      // Predicated region
      $region13: #{decoder_forward.2} parent=11 // pred_check
        %p195 = pneg %p60
      $region14: #{decoder_forward.2} parent=11 // pred_check_branch
        %197 = sbr.rel (%p195) target = $region16
      $region15: #{decoder_forward.2} parent=11 // pred_region
        _
      $region16: #{decoder_forward.2} parent=11 // pred_fallthru
        _
      // Predicated region
      $region17: #{decoder_forward.2} parent=11 // pred_check
        %p198 = pneg %p81
      $region18: #{decoder_forward.2} parent=11 // pred_check_branch
        %200 = sbr.rel (%p198) target = $region20
      $region19: #{decoder_forward.2} parent=11 // pred_region
        _
      $region20: #{decoder_forward.2} parent=11 // pred_fallthru
        _
      // Predicated region
      $region21: #{decoder_forward.2} parent=11 // pred_check
        %p201 = pneg %p102
      $region22: #{decoder_forward.2} parent=11 // pred_check_branch
        %203 = sbr.rel (%p201) target = $region24
      $region23: #{decoder_forward.2} parent=11 // pred_region
        _
      $region24: #{decoder_forward.2} parent=11 // pred_fallthru
        _
    $region12: #{decoder_forward.2} parent=5 // pred_fallthru
      _
    %p204 = scmp.lt.s32.totalorder %s13, 4
    // Predicated region
    $region25: #{decoder_forward.2} parent=5 // pred_check
      %p205 = pneg %p204
    $region26: #{decoder_forward.2} parent=5 // pred_check_branch
      %207 = sbr.rel (%p205) target = $region28
    $region27: #{decoder_forward.2} parent=5 // pred_region
      // Predicated region
      $region29: #{decoder_forward.2} parent=27 // pred_check
        %p208 = pneg %p33
      $region30: #{decoder_forward.2} parent=27 // pred_check_branch
        %210 = sbr.rel (%p208) target = $region32
      $region31: #{decoder_forward.2} parent=27 // pred_region
        %s211 = smul.u32 16, %s13
        %p212 = scmp.lt.s32.totalorder %s211, 63
        %s213 = scalar_select %p212, %s211, 63
        %s214 = smul.addr %s213, 4
        %s215 = scalar_lea.vmem %s0, %s214
        %s216 = smul.u32 16, %s13
      $region32: #{decoder_forward.2} parent=27 // pred_fallthru
        _
    $region28: #{decoder_forward.2} parent=5 // pred_fallthru
      _
    %p217 = scmp.le.s32.totalorder 1, %s13
    %p218 = scmp.lt.s32.totalorder %s13, 5
    %p219 = pnand %p217, %p218
    %p220 = pneg %p219
    // Predicated region
    $region33: #{decoder_forward.2} parent=5 // pred_check
      _
    $region34: #{decoder_forward.2} parent=5 // pred_check_branch
      %222 = sbr.rel (%p219) target = $region36
    $region35: #{decoder_forward.2} parent=5 // pred_region
      %s223 = ssub.s32 %s13, 1
      %s224 = smul.u32 16, %s18
      %p225 = scmp.lt.s32.totalorder %s224, 63
      %s226 = scalar_select %p225, %s224, 63
      %s227 = smul.addr %s226, 4
      %s228 = scalar_lea.vmem %s0, %s227
      %p229 = pneg %p39
      %p230 = pneg %p36
      %p231 = pneg %p60
      %p232 = pneg %p57
      %p233 = pneg %p81
      %p234 = pneg %p78
      %p235 = pneg %p102
      %p236 = pneg %p99
      %p237 = pneg %p128
      %p238 = pneg %p125
      %s239 = smul.u32 16, %s18
      %p240 = scmp.lt.s32.totalorder %s239, 63
      %s241 = scalar_select %p240, %s239, 63
      %s242 = smul.addr %s241, 8
      %s243 = scalar_lea.vmem %s4, %s242
      %p244 = pneg %p154
      %p245 = pneg %p151
      %p246 = scmp.lt.s32.totalorder %s18, 3
      %s247 = scalar_select %p246, %s18, 3
      %s248 = scalar_lea.vmem %s5, %s247
      %p249 = pneg %p180
      %p250 = pneg %p177
      %p251 = scmp.lt.s32.totalorder %s18, 3
      %s252 = scalar_select %p251, %s18, 3
      %s253 = scalar_lea.vmem %s6, %s252
      %s254 = smul.u32 16, %s18
      %p255 = scmp.lt.s32.totalorder %s254, 63
      %s256 = scalar_select %p255, %s254, 63
      %s257 = smul.addr %s256, 4
      %s258 = scalar_lea.vmem %s0, %s257
      %s259 = smul.u32 16, %s18
      %s260 = smul.u32 16, %s18
      %p261 = scmp.lt.s32.totalorder %s260, 63
      %s262 = scalar_select %p261, %s260, 63
      %s263 = smul.addr %s262, 8
      %s264 = scalar_lea.vmem %s4, %s263
      %s265 = smul.u32 16, %s18
      %p266 = scmp.lt.s32.totalorder %s18, 3
      %s267 = scalar_select %p266, %s18, 3
      %s268 = scalar_lea.vmem %s5, %s267
      %p269 = scmp.lt.s32.totalorder %s18, 3
      %s270 = scalar_select %p269, %s18, 3
      %s271 = scalar_lea.vmem %s6, %s270
      %v273 = vld [vmem:[%s258] sm:$0xf]
      %v274 = vld [vmem:[%s258 + $0x4] sm:$0xf]
      %v275 = vld [vmem:[%s258 + $0x8] sm:$0xf]
      %v276 = vld [vmem:[%s258 + $0xc] sm:$0xf]
      %v277 = vld [vmem:[%s258 + $0x10] sm:$0xf]
      %v278 = vld [vmem:[%s258 + $0x14] sm:$0xf]
      %v279 = vld [vmem:[%s258 + $0x18] sm:$0xf]
      %v280 = vld [vmem:[%s258 + $0x1c] sm:$0xf]
      %v281 = vld [vmem:[%s258 + $0x20] sm:$0xf]
      %v282 = vld [vmem:[%s258 + $0x24] sm:$0xf]
      %v283 = vld [vmem:[%s258 + $0x28] sm:$0xf]
      %v284 = vld [vmem:[%s258 + $0x2c] sm:$0xf]
      %v285 = vld [vmem:[%s258 + $0x30] sm:$0xf]
      %v286 = vld [vmem:[%s258 + $0x34] sm:$0xf]
      %v287 = vld [vmem:[%s258 + $0x38] sm:$0xf]
      %v288 = vld [vmem:[%s258 + $0x3c] sm:$0xf]
      %v289 = vld [vmem:[%s1] sm:$0xf]
      %v290 = vld [vmem:[%s1 + $0x4] sm:$0xf]
      %v291 = vld [vmem:[%s1 + $0x8] sm:$0xf]
      %v292 = vld [vmem:[%s1 + $0xc] sm:$0xf]
      %v293 = vld [vmem:[%s2] sm:$0x1]
      %v295 = vperm.slane %v293, 0
      %v313 = vunpack.c.l.b16 %v273
      %v314 = vunpack.c.l.b16 %v274
      %v315 = vunpack.c.l.b16 %v275
      %v316 = vunpack.c.l.b16 %v276
      %v317 = vunpack.c.l.b16 %v277
      %v318 = vunpack.c.l.b16 %v278
      %v319 = vunpack.c.l.b16 %v279
      %v320 = vunpack.c.l.b16 %v280
      %v321 = vunpack.c.l.b16 %v281
      %v322 = vunpack.c.l.b16 %v282
      %v323 = vunpack.c.l.b16 %v283
      %v324 = vunpack.c.l.b16 %v284
      %v325 = vunpack.c.l.b16 %v285
      %v326 = vunpack.c.l.b16 %v286
      %v327 = vunpack.c.l.b16 %v287
      %v328 = vunpack.c.l.b16 %v288
      %v329 = vpack.c.b16 %v314, %v313
      %v330 = vpack.c.b16 %v316, %v315
      %v331 = vpack.c.b16 %v318, %v317
      %v332 = vpack.c.b16 %v320, %v319
      %v333 = vpack.c.b16 %v322, %v321
      %v334 = vpack.c.b16 %v324, %v323
      %v335 = vpack.c.b16 %v326, %v325
      %v336 = vpack.c.b16 %v328, %v327
      %v341 = vunpack.c.l.b16 %v289
      %v342 = vunpack.c.l.b16 %v290
      %v343 = vunpack.c.l.b16 %v291
      %v344 = vunpack.c.l.b16 %v292
      %v345 = vpack.c.b16 %v342, %v341
      %v346 = vpack.c.b16 %v344, %v343
      %vm349 = vcmask 261120
      %v351 = vsel %vm349, %v329, 0
      %v354 = vsel %vm349, %v330, 0
      %v357 = vsel %vm349, %v331, 0
      %v360 = vsel %vm349, %v332, 0
      %v363 = vsel %vm349, %v333, 0
      %v366 = vsel %vm349, %v334, 0
      %v369 = vsel %vm349, %v335, 0
      %v372 = vsel %vm349, %v336, 0
      %374 = vmatpush.bf16.msra.mxu0 0
      %375 = vmatpush.bf16.msra.mxu0 0
      %376 = vmatpush.bf16.msra.mxu0 0
      %377 = vmatpush.bf16.msra.mxu0 0
      %378 = vmatpush.bf16.msra.mxu0 0
      %379 = vmatpush.bf16.msra.mxu0 0
      %380 = vmatpush.bf16.msra.mxu0 %v346
      %381 = vmatpush.bf16.msra.mxu0 %v345
      %382 = vmatmul.bf16.gmra.mxu0 %v351
      %v383 = vpop.f32.mrf.mxu0
      %v384 = vadd.f32 %v295, %v383
      %v385 = vpop.f32.mrf.mxu0
      %v386 = vadd.f32 %v295, %v385
      %387 = vmatmul.bf16.gmra.mxu0 %v354
      %v388 = vpop.f32.mrf.mxu0
      %v389 = vadd.f32 %v295, %v388
      %v390 = vpop.f32.mrf.mxu0
      %v391 = vadd.f32 %v295, %v390
      %392 = vmatmul.bf16.gmra.mxu0 %v357
      %v393 = vpop.f32.mrf.mxu0
      %v394 = vadd.f32 %v295, %v393
      %v395 = vpop.f32.mrf.mxu0
      %v396 = vadd.f32 %v295, %v395
      %397 = vmatmul.bf16.gmra.mxu0 %v360
      %v398 = vpop.f32.mrf.mxu0
      %v399 = vadd.f32 %v295, %v398
      %v400 = vpop.f32.mrf.mxu0
      %v401 = vadd.f32 %v295, %v400
      %402 = vmatmul.bf16.gmra.mxu0 %v363
      %v403 = vpop.f32.mrf.mxu0
      %v404 = vadd.f32 %v295, %v403
      %v405 = vpop.f32.mrf.mxu0
      %v406 = vadd.f32 %v295, %v405
      %407 = vmatmul.bf16.gmra.mxu0 %v366
      %v408 = vpop.f32.mrf.mxu0
      %v409 = vadd.f32 %v295, %v408
      %v410 = vpop.f32.mrf.mxu0
      %v411 = vadd.f32 %v295, %v410
      %412 = vmatmul.bf16.gmra.mxu0 %v369
      %v413 = vpop.f32.mrf.mxu0
      %v414 = vadd.f32 %v295, %v413
      %v415 = vpop.f32.mrf.mxu0
      %v416 = vadd.f32 %v295, %v415
      %417 = vmatmul.bf16.gmra.mxu0 %v372
      %v418 = vpop.f32.mrf.mxu0
      %v419 = vadd.f32 %v295, %v418
      %v420 = vpop.f32.mrf.mxu0
      %v421 = vadd.f32 %v295, %v420
      %422 = vdwg.mxu0
      %423 = vst.msk [vmem:[%s264] sm:$0xff] %vm349, %v384
      %424 = vst.msk [vmem:[%s264 + $0x8] sm:$0xff] %vm349, %v386
      %425 = vst.msk [vmem:[%s264 + $0x10] sm:$0xff] %vm349, %v389
      %426 = vst.msk [vmem:[%s264 + $0x18] sm:$0xff] %vm349, %v391
      %427 = vst.msk [vmem:[%s264 + $0x20] sm:$0xff] %vm349, %v394
      %428 = vst.msk [vmem:[%s264 + $0x28] sm:$0xff] %vm349, %v396
      %429 = vst.msk [vmem:[%s264 + $0x30] sm:$0xff] %vm349, %v399
      %430 = vst.msk [vmem:[%s264 + $0x38] sm:$0xff] %vm349, %v401
      %431 = vst.msk [vmem:[%s264 + $0x40] sm:$0xff] %vm349, %v404
      %432 = vst.msk [vmem:[%s264 + $0x48] sm:$0xff] %vm349, %v406
      %433 = vst.msk [vmem:[%s264 + $0x50] sm:$0xff] %vm349, %v409
      %434 = vst.msk [vmem:[%s264 + $0x58] sm:$0xff] %vm349, %v411
      %435 = vst.msk [vmem:[%s264 + $0x60] sm:$0xff] %vm349, %v414
      %436 = vst.msk [vmem:[%s264 + $0x68] sm:$0xff] %vm349, %v416
      %437 = vst.msk [vmem:[%s264 + $0x70] sm:$0xff] %vm349, %v419
      %438 = vst.msk [vmem:[%s264 + $0x78] sm:$0xff] %vm349, %v421
      %v439 = vsel %vm349, %v384, 0.0
      %v440 = vsel %vm349, %v386, 0.0
      %v441 = vadd.f32 %v439, %v440
      %v442 = vsel %vm349, %v389, 0.0
      %v443 = vadd.f32 %v441, %v442
      %v444 = vsel %vm349, %v391, 0.0
      %v445 = vadd.f32 %v443, %v444
      %v446 = vsel %vm349, %v394, 0.0
      %v447 = vadd.f32 %v445, %v446
      %v448 = vsel %vm349, %v396, 0.0
      %v449 = vadd.f32 %v447, %v448
      %v450 = vsel %vm349, %v399, 0.0
      %v451 = vadd.f32 %v449, %v450
      %v452 = vsel %vm349, %v401, 0.0
      %v453 = vadd.f32 %v451, %v452
      %v454 = vsel %vm349, %v404, 0.0
      %v455 = vadd.f32 %v453, %v454
      %v456 = vsel %vm349, %v406, 0.0
      %v457 = vadd.f32 %v455, %v456
      %v458 = vsel %vm349, %v409, 0.0
      %v459 = vadd.f32 %v457, %v458
      %v460 = vsel %vm349, %v411, 0.0
      %v461 = vadd.f32 %v459, %v460
      %v462 = vsel %vm349, %v414, 0.0
      %v463 = vadd.f32 %v461, %v462
      %v464 = vsel %vm349, %v416, 0.0
      %v465 = vadd.f32 %v463, %v464
      %v466 = vsel %vm349, %v419, 0.0
      %v467 = vadd.f32 %v465, %v466
      %v468 = vsel %vm349, %v421, 0.0
      %v469 = vadd.f32 %v467, %v468
      %v470 = vrot.slane %v469, 4
      %v471 = vadd.f32 %v469, %v470
      %v472 = vrot.slane %v471, 2
      %v473 = vadd.f32 %v471, %v472
      %v474 = vrot.slane %v473, 1
      %v475 = vadd.f32 %v473, %v474
      %v476 = vmul.f32 %v384, %v384
      %v477 = vmul.f32 %v386, %v386
      %v478 = vmul.f32 %v389, %v389
      %v479 = vmul.f32 %v391, %v391
      %v480 = vmul.f32 %v394, %v394
      %v481 = vmul.f32 %v396, %v396
      %v482 = vmul.f32 %v399, %v399
      %v483 = vmul.f32 %v401, %v401
      %v484 = vmul.f32 %v404, %v404
      %v485 = vmul.f32 %v406, %v406
      %v486 = vmul.f32 %v409, %v409
      %v487 = vmul.f32 %v411, %v411
      %v488 = vmul.f32 %v414, %v414
      %v489 = vmul.f32 %v416, %v416
      %v490 = vmul.f32 %v419, %v419
      %v491 = vmul.f32 %v421, %v421
      %v492 = vsel %vm349, %v476, 0.0
      %v493 = vsel %vm349, %v477, 0.0
      %v494 = vadd.f32 %v492, %v493
      %v495 = vsel %vm349, %v478, 0.0
      %v496 = vadd.f32 %v494, %v495
      %v497 = vsel %vm349, %v479, 0.0
      %v498 = vadd.f32 %v496, %v497
      %v499 = vsel %vm349, %v480, 0.0
      %v500 = vadd.f32 %v498, %v499
      %v501 = vsel %vm349, %v481, 0.0
      %v502 = vadd.f32 %v500, %v501
      %v503 = vsel %vm349, %v482, 0.0
      %v504 = vadd.f32 %v502, %v503
      %v505 = vsel %vm349, %v483, 0.0
      %v506 = vadd.f32 %v504, %v505
      %v507 = vsel %vm349, %v484, 0.0
      %v508 = vadd.f32 %v506, %v507
      %v509 = vsel %vm349, %v485, 0.0
      %v510 = vadd.f32 %v508, %v509
      %v511 = vsel %vm349, %v486, 0.0
      %v512 = vadd.f32 %v510, %v511
      %v513 = vsel %vm349, %v487, 0.0
      %v514 = vadd.f32 %v512, %v513
      %v515 = vsel %vm349, %v488, 0.0
      %v516 = vadd.f32 %v514, %v515
      %v517 = vsel %vm349, %v489, 0.0
      %v518 = vadd.f32 %v516, %v517
      %v519 = vsel %vm349, %v490, 0.0
      %v520 = vadd.f32 %v518, %v519
      %v521 = vsel %vm349, %v491, 0.0
      %v522 = vadd.f32 %v520, %v521
      %v523 = vrot.slane %v522, 4
      %v524 = vadd.f32 %v522, %v523
      %v525 = vrot.slane %v524, 2
      %v526 = vadd.f32 %v524, %v525
      %v527 = vrot.slane %v526, 1
      %v528 = vadd.f32 %v526, %v527
      %v529 = vld [vmem:[%s3] sm:$0xff]
      %v530 = vld [vmem:[%s3 + $0x8] sm:$0xff]
      %v531 = vld [vmem:[%s3 + $0x10] sm:$0xff]
      %v532 = vld [vmem:[%s3 + $0x18] sm:$0xff]
      %v534 = vsel %vm349, %v475, 0
      %536 = vmatpush.msra.mxu0 0.0
      %537 = vmatpush.msra.mxu0 0.0
      %538 = vmatpush.msra.mxu0 0.0
      %539 = vmatpush.msra.mxu0 0.0
      %540 = vmatpush.msra.mxu0 0.0
      %541 = vmatpush.msra.mxu0 0.0
      %542 = vmatpush.msra.mxu0 0.0
      %543 = vmatpush.msra.mxu0 0.0
      %544 = vmatpush.msra.mxu0 0.0
      %545 = vmatpush.msra.mxu0 0.0
      %546 = vmatpush.msra.mxu0 0.0
      %547 = vmatpush.msra.mxu0 0.0
      %548 = vmatpush.msra.mxu0 %v532
      %549 = vmatpush.msra.mxu0 %v531
      %550 = vmatpush.msra.mxu0 %v530
      %551 = vmatpush.msra.mxu0 %v529
      %552 = vmatmul.f32.gmra.mxu0 %v534
      %v553 = vpop.f32.mrf.mxu0
      %v554 = vadd.f32 0.0, %v553
      %555 = vdwg.mxu0
      %vm556 = vcmask 57344
      %557 = vst.msk [vmem:[%s268] sm:$0x1] %vm556, %v554
      %v558 = vld [vmem:[%s3] sm:$0xff]
      %v559 = vld [vmem:[%s3 + $0x8] sm:$0xff]
      %v560 = vld [vmem:[%s3 + $0x10] sm:$0xff]
      %v561 = vld [vmem:[%s3 + $0x18] sm:$0xff]
      %v563 = vsel %vm349, %v528, 0
      %565 = vmatpush.msra.mxu0 0.0
      %566 = vmatpush.msra.mxu0 0.0
      %567 = vmatpush.msra.mxu0 0.0
      %568 = vmatpush.msra.mxu0 0.0
      %569 = vmatpush.msra.mxu0 0.0
      %570 = vmatpush.msra.mxu0 0.0
      %571 = vmatpush.msra.mxu0 0.0
      %572 = vmatpush.msra.mxu0 0.0
      %573 = vmatpush.msra.mxu0 0.0
      %574 = vmatpush.msra.mxu0 0.0
      %575 = vmatpush.msra.mxu0 0.0
      %576 = vmatpush.msra.mxu0 0.0
      %577 = vmatpush.msra.mxu0 %v561
      %578 = vmatpush.msra.mxu0 %v560
      %579 = vmatpush.msra.mxu0 %v559
      %580 = vmatpush.msra.mxu0 %v558
      %581 = vmatmul.f32.gmra.mxu0 %v563
      %v582 = vpop.f32.mrf.mxu0
      %v583 = vadd.f32 0.0, %v582
      %584 = vdwg.mxu0
      %585 = vst.msk [vmem:[%s271] sm:$0x1] %vm556, %v583
      %s586 = smul.u32 16, %s18
      %p587 = scmp.lt.s32.totalorder %s586, 63
      %s588 = scalar_select %p587, %s586, 63
      %s589 = smul.addr %s588, 8
      %s590 = scalar_lea.vmem %s4, %s589
      %p591 = scmp.lt.s32.totalorder %s18, 3
      %s592 = scalar_select %p591, %s18, 3
      %s593 = scalar_lea.vmem %s5, %s592
      %p594 = scmp.lt.s32.totalorder %s18, 3
      %s595 = scalar_select %p594, %s18, 3
      %s596 = scalar_lea.vmem %s6, %s595
      // Predicated region
      $region37: #{decoder_forward.2} parent=35 // pred_check
        %p597 = pneg %p125
      $region38: #{decoder_forward.2} parent=35 // pred_check_branch
        %599 = sbr.rel (%p597) target = $region40
      $region39: #{decoder_forward.2} parent=35 // pred_region
        %s600 = smul.u32 16, %s18
      $region40: #{decoder_forward.2} parent=35 // pred_fallthru
        _
      // Predicated region
      $region41: #{decoder_forward.2} parent=35 // pred_check
        %p601 = pneg %p151
      $region42: #{decoder_forward.2} parent=35 // pred_check_branch
        %603 = sbr.rel (%p601) target = $region44
      $region43: #{decoder_forward.2} parent=35 // pred_region
        _
      $region44: #{decoder_forward.2} parent=35 // pred_fallthru
        _
      // Predicated region
      $region45: #{decoder_forward.2} parent=35 // pred_check
        %p604 = pneg %p177
      $region46: #{decoder_forward.2} parent=35 // pred_check_branch
        %606 = sbr.rel (%p604) target = $region48
      $region47: #{decoder_forward.2} parent=35 // pred_region
        _
      $region48: #{decoder_forward.2} parent=35 // pred_fallthru
        _
    $region36: #{decoder_forward.2} parent=5 // pred_fallthru
      _
    %p607 = scmp.le.s32.totalorder 2, %s13
    // Predicated region
    $region49: #{decoder_forward.2} parent=5 // pred_check
      %p608 = pneg %p607
    $region50: #{decoder_forward.2} parent=5 // pred_check_branch
      %610 = sbr.rel (%p608) target = $region52
    $region51: #{decoder_forward.2} parent=5 // pred_region
      %s611 = ssub.s32 %s13, 2
      // Predicated region
      $region53: #{decoder_forward.2} parent=51 // pred_check
        %p612 = pneg %p131
      $region54: #{decoder_forward.2} parent=51 // pred_check_branch
        %614 = sbr.rel (%p612) target = $region56
      $region55: #{decoder_forward.2} parent=51 // pred_region
        %s615 = smul.u32 16, %s19
        %p616 = scmp.lt.s32.totalorder %s615, 63
        %s617 = scalar_select %p616, %s615, 63
        %s618 = smul.addr %s617, 8
        %s619 = scalar_lea.vmem %s4, %s618
      $region56: #{decoder_forward.2} parent=51 // pred_fallthru
        _
      // Predicated region
      $region57: #{decoder_forward.2} parent=51 // pred_check
        %p620 = pneg %p157
      $region58: #{decoder_forward.2} parent=51 // pred_check_branch
        %622 = sbr.rel (%p620) target = $region60
      $region59: #{decoder_forward.2} parent=51 // pred_region
        %p623 = scmp.lt.s32.totalorder %s19, 3
        %s624 = scalar_select %p623, %s19, 3
        %s625 = scalar_lea.vmem %s5, %s624
      $region60: #{decoder_forward.2} parent=51 // pred_fallthru
        _
      // Predicated region
      $region61: #{decoder_forward.2} parent=51 // pred_check
        %p626 = pneg %p183
      $region62: #{decoder_forward.2} parent=51 // pred_check_branch
        %628 = sbr.rel (%p626) target = $region64
      $region63: #{decoder_forward.2} parent=51 // pred_region
        %p629 = scmp.lt.s32.totalorder %s19, 3
        %s630 = scalar_select %p629, %s19, 3
        %s631 = scalar_lea.vmem %s6, %s630
      $region64: #{decoder_forward.2} parent=51 // pred_fallthru
        _
    $region52: #{decoder_forward.2} parent=5 // pred_fallthru
      _
  $region6: #{decoder_forward.2} parent=0 // loop_footer
    %s17 = sadd.s32 1, %s13
  $region7: #{decoder_forward.2} parent=0 // loop_footer_branch
    %12 = sbr.rel target = $region3
  $region8: #{decoder_forward.2} parent=0 // loop_exit
    _

// kernel: decoder_forward.3
$region0: #{decoder_forward.3}
  #allocation0 [shape = 'u32[]', space=smem, size = 0x4, offset = 0x4, fixed_abs, tag = 'smem constant byte address 0x4 - core index']
  #allocation1 [shape = 'u32[72,128]{1,0:T(1,128)}', space=vmem, size = 0x9000, scoped, tag = 'internal scratch']
  %s0 = inlined_call_operand.vmem [shape: f32[512,32], index: 0, kind: input, shape index: {}]
  %s1 = inlined_call_operand.vmem [shape: f32[4,1,8], index: 1, kind: input, shape index: {}]
  %s2 = inlined_call_operand.vmem [shape: f32[4,1,8], index: 2, kind: input, shape index: {}]
  %s3 = inlined_call_operand.vmem [shape: f32[8,32], index: 3, kind: input, shape index: {}]
  %s4 = inlined_call_operand.vmem [shape: f32[512,32], index: 4, kind: output, shape index: {}]
  %s5 = sld [smem:[#allocation0]]
  $region49: #{decoder_forward.3} parent=0
    _
  %s7 = ssub.s32 1, %s5
  %s8 = scalar_select 0, %s7, %s5
  loop: start=0, step=1, limit=6
  $region2: #{decoder_forward.3} parent=0 // loop_pre_header
    _
  $region3: #{decoder_forward.3} parent=0 // loop_header
    %s10 = sphi 0, %s14
    %p11 = scmp.ge.s32.totalorder %s10, 6
    %s20 = sphi 0, %s22
    %s23 = sphi 0, %s20
    %s24 = sphi 0, %s23
    %s40 = sphi 0, %s24
    %s44 = sphi 0, %s44
    %s46 = sphi 0, %s44
    %s47 = sphi 0, %s46
    %s61 = sphi 0, %s47
    %s65 = sphi 0, %s65
    %s67 = sphi 0, %s65
    %s68 = sphi 0, %s67
    %s82 = sphi 0, %s68
    %s86 = sphi 0, %s86
    %s88 = sphi 0, %s86
    %s89 = sphi 0, %s88
    %s103 = sphi 0, %s89
    %s109 = sphi 0, %s111
    %s112 = sphi 0, %s109
    %s113 = sphi 0, %s112
    %s129 = sphi 0, %s113
  $region4: #{decoder_forward.3} parent=0 // loop_header_branch
    %13 = sbr.rel (%p11) target = $region8
  $region5: #{decoder_forward.3} parent=0 // loop_body
    %s15 = ssub.s32 %s10, 1
    %s16 = ssub.s32 %s10, 2
    %s17 = sadd.s32 %s10, 1
    %s18 = ssub.s32 %s10, %s17
    %p19 = scmp.eq.s32.totalorder %s18, 0
    %s21 = sadd.s32 %s20, 1
    %s22 = scalar_select %p19, %s20, %s21
    %p25 = pneg %p19
    %p26 = scmp.eq.s32.totalorder %s10, 3
    %p27 = por %p25, %p26
    %p28 = scmp.ne.s32.totalorder %s20, %s23
    %p29 = scmp.eq.s32.totalorder %s10, 0
    %p30 = por %p28, %p29
    %p31 = scmp.ne.s32.totalorder %s20, %s23
    %p32 = scmp.eq.s32.totalorder %s15, 3
    %p33 = por %p31, %p32
    %p34 = scmp.ne.s32.totalorder %s23, %s24
    %p35 = scmp.eq.s32.totalorder %s15, 0
    %p36 = por %p34, %p35
    %p37 = scmp.ne.s32.totalorder %s23, %s24
    %p38 = scmp.eq.s32.totalorder %s16, 3
    %p39 = por %p37, %p38
    %p41 = scmp.ne.s32.totalorder %s24, %s40
    %p42 = scmp.eq.s32.totalorder %s16, 0
    %p43 = por %p41, %p42
    %s45 = sadd.s32 %s44, 1
    %p48 = scmp.eq.s32.totalorder %s10, 3
    %p49 = scmp.ne.s32.totalorder %s44, %s46
    %p50 = scmp.eq.s32.totalorder %s10, 0
    %p51 = por %p49, %p50
    %p52 = scmp.ne.s32.totalorder %s44, %s46
    %p53 = scmp.eq.s32.totalorder %s15, 3
    %p54 = por %p52, %p53
    %p55 = scmp.ne.s32.totalorder %s46, %s47
    %p56 = scmp.eq.s32.totalorder %s15, 0
    %p57 = por %p55, %p56
    %p58 = scmp.ne.s32.totalorder %s46, %s47
    %p59 = scmp.eq.s32.totalorder %s16, 3
    %p60 = por %p58, %p59
    %p62 = scmp.ne.s32.totalorder %s47, %s61
    %p63 = scmp.eq.s32.totalorder %s16, 0
    %p64 = por %p62, %p63
    %s66 = sadd.s32 %s65, 1
    %p69 = scmp.eq.s32.totalorder %s10, 3
    %p70 = scmp.ne.s32.totalorder %s65, %s67
    %p71 = scmp.eq.s32.totalorder %s10, 0
    %p72 = por %p70, %p71
    %p73 = scmp.ne.s32.totalorder %s65, %s67
    %p74 = scmp.eq.s32.totalorder %s15, 3
    %p75 = por %p73, %p74
    %p76 = scmp.ne.s32.totalorder %s67, %s68
    %p77 = scmp.eq.s32.totalorder %s15, 0
    %p78 = por %p76, %p77
    %p79 = scmp.ne.s32.totalorder %s67, %s68
    %p80 = scmp.eq.s32.totalorder %s16, 3
    %p81 = por %p79, %p80
    %p83 = scmp.ne.s32.totalorder %s68, %s82
    %p84 = scmp.eq.s32.totalorder %s16, 0
    %p85 = por %p83, %p84
    %s87 = sadd.s32 %s86, 1
    %p90 = scmp.eq.s32.totalorder %s10, 3
    %p91 = scmp.ne.s32.totalorder %s86, %s88
    %p92 = scmp.eq.s32.totalorder %s10, 0
    %p93 = por %p91, %p92
    %p94 = scmp.ne.s32.totalorder %s86, %s88
    %p95 = scmp.eq.s32.totalorder %s15, 3
    %p96 = por %p94, %p95
    %p97 = scmp.ne.s32.totalorder %s88, %s89
    %p98 = scmp.eq.s32.totalorder %s15, 0
    %p99 = por %p97, %p98
    %p100 = scmp.ne.s32.totalorder %s88, %s89
    %p101 = scmp.eq.s32.totalorder %s16, 3
    %p102 = por %p100, %p101
    %p104 = scmp.ne.s32.totalorder %s89, %s103
    %p105 = scmp.eq.s32.totalorder %s16, 0
    %p106 = por %p104, %p105
    %s107 = ssub.s32 %s10, %s17
    %p108 = scmp.eq.s32.totalorder %s107, 0
    %s110 = sadd.s32 %s109, 1
    %s111 = scalar_select %p108, %s109, %s110
    %p114 = pneg %p108
    %p115 = scmp.eq.s32.totalorder %s10, 3
    %p116 = por %p114, %p115
    %p117 = scmp.ne.s32.totalorder %s109, %s112
    %p118 = scmp.eq.s32.totalorder %s10, 0
    %p119 = por %p117, %p118
    %p120 = scmp.ne.s32.totalorder %s109, %s112
    %p121 = scmp.eq.s32.totalorder %s15, 3
    %p122 = por %p120, %p121
    %p123 = scmp.ne.s32.totalorder %s112, %s113
    %p124 = scmp.eq.s32.totalorder %s15, 0
    %p125 = por %p123, %p124
    %p126 = scmp.ne.s32.totalorder %s112, %s113
    %p127 = scmp.eq.s32.totalorder %s16, 3
    %p128 = por %p126, %p127
    %p130 = scmp.ne.s32.totalorder %s113, %s129
    %p131 = scmp.eq.s32.totalorder %s16, 0
    %p132 = por %p130, %p131
    %p133 = scmp.le.s32.totalorder 1, %s10
    %p134 = scmp.lt.s32.totalorder %s10, 5
    %p135 = pnand %p133, %p134
    %p136 = pneg %p135
    // Predicated region
    $region9: #{decoder_forward.3} parent=5 // pred_check
      _
    $region10: #{decoder_forward.3} parent=5 // pred_check_branch
      %138 = sbr.rel (%p135) target = $region12
    $region11: #{decoder_forward.3} parent=5 // pred_region
      %s139 = ssub.s32 %s10, 1
      // Predicated region
      $region13: #{decoder_forward.3} parent=11 // pred_check
        %p140 = pneg %p57
      $region14: #{decoder_forward.3} parent=11 // pred_check_branch
        %142 = sbr.rel (%p140) target = $region16
      $region15: #{decoder_forward.3} parent=11 // pred_region
        _
      $region16: #{decoder_forward.3} parent=11 // pred_fallthru
        _
      // Predicated region
      $region17: #{decoder_forward.3} parent=11 // pred_check
        %p143 = pneg %p78
      $region18: #{decoder_forward.3} parent=11 // pred_check_branch
        %145 = sbr.rel (%p143) target = $region20
      $region19: #{decoder_forward.3} parent=11 // pred_region
        _
      $region20: #{decoder_forward.3} parent=11 // pred_fallthru
        _
      // Predicated region
      $region21: #{decoder_forward.3} parent=11 // pred_check
        %p146 = pneg %p99
      $region22: #{decoder_forward.3} parent=11 // pred_check_branch
        %148 = sbr.rel (%p146) target = $region24
      $region23: #{decoder_forward.3} parent=11 // pred_region
        _
      $region24: #{decoder_forward.3} parent=11 // pred_fallthru
        _
    $region12: #{decoder_forward.3} parent=5 // pred_fallthru
      _
    %p149 = scmp.lt.s32.totalorder %s10, 4
    // Predicated region
    $region25: #{decoder_forward.3} parent=5 // pred_check
      %p150 = pneg %p149
    $region26: #{decoder_forward.3} parent=5 // pred_check_branch
      %152 = sbr.rel (%p150) target = $region28
    $region27: #{decoder_forward.3} parent=5 // pred_region
      // Predicated region
      $region29: #{decoder_forward.3} parent=27 // pred_check
        %p153 = pneg %p30
      $region30: #{decoder_forward.3} parent=27 // pred_check_branch
        %155 = sbr.rel (%p153) target = $region32
      $region31: #{decoder_forward.3} parent=27 // pred_region
        %s156 = smul.u32 16, %s10
        %p157 = scmp.lt.s32.totalorder %s156, 63
        %s158 = scalar_select %p157, %s156, 63
        %s159 = smul.addr %s158, 8
        %s160 = scalar_lea.vmem %s0, %s159
        %s161 = smul.u32 16, %s10
      $region32: #{decoder_forward.3} parent=27 // pred_fallthru
        _
    $region28: #{decoder_forward.3} parent=5 // pred_fallthru
      _
    %p162 = scmp.le.s32.totalorder 1, %s10
    %p163 = scmp.lt.s32.totalorder %s10, 5
    %p164 = pnand %p162, %p163
    %p165 = pneg %p164
    // Predicated region
    $region33: #{decoder_forward.3} parent=5 // pred_check
      _
    $region34: #{decoder_forward.3} parent=5 // pred_check_branch
      %167 = sbr.rel (%p164) target = $region36
    $region35: #{decoder_forward.3} parent=5 // pred_region
      %s168 = ssub.s32 %s10, 1
      %s169 = smul.u32 16, %s15
      %p170 = scmp.lt.s32.totalorder %s169, 63
      %s171 = scalar_select %p170, %s169, 63
      %s172 = smul.addr %s171, 8
      %s173 = scalar_lea.vmem %s0, %s172
      %p174 = pneg %p36
      %p175 = pneg %p33
      %p176 = pneg %p57
      %p177 = pneg %p54
      %p178 = pneg %p78
      %p179 = pneg %p75
      %p180 = pneg %p99
      %p181 = pneg %p96
      %p182 = pneg %p125
      %p183 = pneg %p122
      %s184 = smul.u32 16, %s15
      %p185 = scmp.lt.s32.totalorder %s184, 63
      %s186 = scalar_select %p185, %s184, 63
      %s187 = smul.addr %s186, 8
      %s188 = scalar_lea.vmem %s4, %s187
      %s189 = smul.u32 16, %s15
      %p190 = scmp.lt.s32.totalorder %s189, 63
      %s191 = scalar_select %p190, %s189, 63
      %s192 = smul.addr %s191, 8
      %s193 = scalar_lea.vmem %s0, %s192
      %s194 = smul.u32 16, %s15
      %s195 = smul.u32 16, %s15
      %p196 = scmp.lt.s32.totalorder %s195, 63
      %s197 = scalar_select %p196, %s195, 63
      %s198 = smul.addr %s197, 8
      %s199 = scalar_lea.vmem %s4, %s198
      %s200 = smul.u32 16, %s15
      %v201 = vld [vmem:[%s1] sm:$0x1]
      %v202 = vld [vmem:[%s1 + $0x1] sm:$0x1]
      %v203 = vld [vmem:[%s1 + $0x2] sm:$0x1]
      %v204 = vld [vmem:[%s1 + $0x3] sm:$0x1]
      %vm205 = vcmask 57344
      %v206 = vsel %vm205, %v201, 0.0
      %v207 = vsel %vm205, %v202, 0.0
      %v208 = vadd.f32 %v206, %v207
      %v209 = vsel %vm205, %v203, 0.0
      %v210 = vadd.f32 %v208, %v209
      %v211 = vsel %vm205, %v204, 0.0
      %v212 = vadd.f32 %v210, %v211
      %v213 = vld [vmem:[%s2] sm:$0x1]
      %v214 = vld [vmem:[%s2 + $0x1] sm:$0x1]
      %v215 = vld [vmem:[%s2 + $0x2] sm:$0x1]
      %v216 = vld [vmem:[%s2 + $0x3] sm:$0x1]
      %v217 = vsel %vm205, %v213, 0.0
      %v218 = vsel %vm205, %v214, 0.0
      %v219 = vadd.f32 %v217, %v218
      %v220 = vsel %vm205, %v215, 0.0
      %v221 = vadd.f32 %v219, %v220
      %v222 = vsel %vm205, %v216, 0.0
      %v223 = vadd.f32 %v221, %v222
      %v224 = vmul.f32 %v212, 0.00048828125
      %v225 = vmul.f32 %v223, 0.00048828125
      %v226 = vmul.f32 %v224, %v224
      %v227 = vsub.f32 %v225, %v226
      %v228 = vadd.f32 %v227, 1e-05
      %v229 = vrsqrt.pop %v228
      %v230 = vmul.f32 %v229, %v228
      %v231 = vmul.f32 %v230, %v229
      %v232 = vmul.f32 0.5, %v231
      %v233 = vsub.f32 1.5, %v232
      %v234 = vmul.f32 %v229, %v233
      %vm235 = vweird.f32 %v228
      %vm236 = vweird.f32 %v229
      %vm237 = vmor %vm235, %vm236
      %v238 = vsel %vm237, %v229, %v234
      %v239 = vld [vmem:[%s3] sm:$0xff]
      %vm240 = vcmask 64512
      %v242 = vsel %vm240, %v224, 0
      %244 = vmatpush.msra.mxu0 0.0
      %245 = vmatpush.msra.mxu0 0.0
      %246 = vmatpush.msra.mxu0 0.0
      %247 = vmatpush.msra.mxu0 0.0
      %248 = vmatpush.msra.mxu0 0.0
      %249 = vmatpush.msra.mxu0 0.0
      %250 = vmatpush.msra.mxu0 0.0
      %251 = vmatpush.msra.mxu0 0.0
      %252 = vmatpush.msra.mxu0 0.0
      %253 = vmatpush.msra.mxu0 0.0
      %254 = vmatpush.msra.mxu0 0.0
      %255 = vmatpush.msra.mxu0 0.0
      %256 = vmatpush.msra.mxu0 0.0
      %257 = vmatpush.msra.mxu0 0.0
      %258 = vmatpush.msra.mxu0 0.0
      %259 = vmatpush.msra.mxu0 %v239
      %260 = vmatmul.f32.gmra.mxu0 %v242
      %v261 = vpop.f32.mrf.mxu0
      %v262 = vadd.f32 0.0, %v261
      %263 = vdwg.mxu0
      %v265 = vsel %vm240, %v238, 0
      %267 = vmatpush.msra.mxu0 0.0
      %268 = vmatpush.msra.mxu0 0.0
      %269 = vmatpush.msra.mxu0 0.0
      %270 = vmatpush.msra.mxu0 0.0
      %271 = vmatpush.msra.mxu0 0.0
      %272 = vmatpush.msra.mxu0 0.0
      %273 = vmatpush.msra.mxu0 0.0
      %274 = vmatpush.msra.mxu0 0.0
      %275 = vmatpush.msra.mxu0 0.0
      %276 = vmatpush.msra.mxu0 0.0
      %277 = vmatpush.msra.mxu0 0.0
      %278 = vmatpush.msra.mxu0 0.0
      %279 = vmatpush.msra.mxu0 0.0
      %280 = vmatpush.msra.mxu0 0.0
      %281 = vmatpush.msra.mxu0 0.0
      %282 = vmatpush.msra.mxu0 %v239
      %283 = vmatmul.f32.gmra.mxu0 %v265
      %v284 = vpop.f32.mrf.mxu0
      %v285 = vadd.f32 0.0, %v284
      %286 = vdwg.mxu0
      %v287 = vld [vmem:[%s193] sm:$0xff]
      %v288 = vld [vmem:[%s193 + $0x8] sm:$0xff]
      %v289 = vld [vmem:[%s193 + $0x10] sm:$0xff]
      %v290 = vld [vmem:[%s193 + $0x18] sm:$0xff]
      %v291 = vld [vmem:[%s193 + $0x20] sm:$0xff]
      %v292 = vld [vmem:[%s193 + $0x28] sm:$0xff]
      %v293 = vld [vmem:[%s193 + $0x30] sm:$0xff]
      %v294 = vld [vmem:[%s193 + $0x38] sm:$0xff]
      %v295 = vld [vmem:[%s193 + $0x40] sm:$0xff]
      %v296 = vld [vmem:[%s193 + $0x48] sm:$0xff]
      %v297 = vld [vmem:[%s193 + $0x50] sm:$0xff]
      %v298 = vld [vmem:[%s193 + $0x58] sm:$0xff]
      %v299 = vld [vmem:[%s193 + $0x60] sm:$0xff]
      %v300 = vld [vmem:[%s193 + $0x68] sm:$0xff]
      %v301 = vld [vmem:[%s193 + $0x70] sm:$0xff]
      %v302 = vld [vmem:[%s193 + $0x78] sm:$0xff]
      %v303 = vperm.slane %v262, 0
      %v304 = vsub.f32 %v287, %v303
      %v305 = vsub.f32 %v288, %v303
      %v306 = vsub.f32 %v289, %v303
      %v307 = vsub.f32 %v290, %v303
      %v308 = vsub.f32 %v291, %v303
      %v309 = vsub.f32 %v292, %v303
      %v310 = vsub.f32 %v293, %v303
      %v311 = vsub.f32 %v294, %v303
      %v312 = vsub.f32 %v295, %v303
      %v313 = vsub.f32 %v296, %v303
      %v314 = vsub.f32 %v297, %v303
      %v315 = vsub.f32 %v298, %v303
      %v316 = vsub.f32 %v299, %v303
      %v317 = vsub.f32 %v300, %v303
      %v318 = vsub.f32 %v301, %v303
      %v319 = vsub.f32 %v302, %v303
      %v320 = vperm.slane %v285, 0
      %v321 = vmul.f32 %v304, %v320
      %v322 = vmul.f32 %v305, %v320
      %v323 = vmul.f32 %v306, %v320
      %v324 = vmul.f32 %v307, %v320
      %v325 = vmul.f32 %v308, %v320
      %v326 = vmul.f32 %v309, %v320
      %v327 = vmul.f32 %v310, %v320
      %v328 = vmul.f32 %v311, %v320
      %v329 = vmul.f32 %v312, %v320
      %v330 = vmul.f32 %v313, %v320
      %v331 = vmul.f32 %v314, %v320
      %v332 = vmul.f32 %v315, %v320
      %v333 = vmul.f32 %v316, %v320
      %v334 = vmul.f32 %v317, %v320
      %v335 = vmul.f32 %v318, %v320
      %v336 = vmul.f32 %v319, %v320
      %vm337 = vcmp.ge.f32.partialorder %v321, 0.0
      %vm338 = vcmp.ge.f32.partialorder %v322, 0.0
      %vm339 = vcmp.ge.f32.partialorder %v323, 0.0
      %vm340 = vcmp.ge.f32.partialorder %v324, 0.0
      %vm341 = vcmp.ge.f32.partialorder %v325, 0.0
      %vm342 = vcmp.ge.f32.partialorder %v326, 0.0
      %vm343 = vcmp.ge.f32.partialorder %v327, 0.0
      %vm344 = vcmp.ge.f32.partialorder %v328, 0.0
      %vm345 = vcmp.ge.f32.partialorder %v329, 0.0
      %vm346 = vcmp.ge.f32.partialorder %v330, 0.0
      %vm347 = vcmp.ge.f32.partialorder %v331, 0.0
      %vm348 = vcmp.ge.f32.partialorder %v332, 0.0
      %vm349 = vcmp.ge.f32.partialorder %v333, 0.0
      %vm350 = vcmp.ge.f32.partialorder %v334, 0.0
      %vm351 = vcmp.ge.f32.partialorder %v335, 0.0
      %vm352 = vcmp.ge.f32.partialorder %v336, 0.0
      %v353 = vmul.f32 %v321, 0.01
      %v354 = vmul.f32 %v322, 0.01
      %v355 = vmul.f32 %v323, 0.01
      %v356 = vmul.f32 %v324, 0.01
      %v357 = vmul.f32 %v325, 0.01
      %v358 = vmul.f32 %v326, 0.01
      %v359 = vmul.f32 %v327, 0.01
      %v360 = vmul.f32 %v328, 0.01
      %v361 = vmul.f32 %v329, 0.01
      %v362 = vmul.f32 %v330, 0.01
      %v363 = vmul.f32 %v331, 0.01
      %v364 = vmul.f32 %v332, 0.01
      %v365 = vmul.f32 %v333, 0.01
      %v366 = vmul.f32 %v334, 0.01
      %v367 = vmul.f32 %v335, 0.01
      %v368 = vmul.f32 %v336, 0.01
      %v369 = vsel %vm337, %v321, %v353
      %v370 = vsel %vm338, %v322, %v354
      %v371 = vsel %vm339, %v323, %v355
      %v372 = vsel %vm340, %v324, %v356
      %v373 = vsel %vm341, %v325, %v357
      %v374 = vsel %vm342, %v326, %v358
      %v375 = vsel %vm343, %v327, %v359
      %v376 = vsel %vm344, %v328, %v360
      %v377 = vsel %vm345, %v329, %v361
      %v378 = vsel %vm346, %v330, %v362
      %v379 = vsel %vm347, %v331, %v363
      %v380 = vsel %vm348, %v332, %v364
      %v381 = vsel %vm349, %v333, %v365
      %v382 = vsel %vm350, %v334, %v366
      %v383 = vsel %vm351, %v335, %v367
      %v384 = vsel %vm352, %v336, %v368
      %vm385 = vcmask 261120
      %386 = vst.msk [vmem:[%s199] sm:$0xff] %vm385, %v369
      %387 = vst.msk [vmem:[%s199 + $0x8] sm:$0xff] %vm385, %v370
      %388 = vst.msk [vmem:[%s199 + $0x10] sm:$0xff] %vm385, %v371
      %389 = vst.msk [vmem:[%s199 + $0x18] sm:$0xff] %vm385, %v372
      %390 = vst.msk [vmem:[%s199 + $0x20] sm:$0xff] %vm385, %v373
      %391 = vst.msk [vmem:[%s199 + $0x28] sm:$0xff] %vm385, %v374
      %392 = vst.msk [vmem:[%s199 + $0x30] sm:$0xff] %vm385, %v375
      %393 = vst.msk [vmem:[%s199 + $0x38] sm:$0xff] %vm385, %v376
      %394 = vst.msk [vmem:[%s199 + $0x40] sm:$0xff] %vm385, %v377
      %395 = vst.msk [vmem:[%s199 + $0x48] sm:$0xff] %vm385, %v378
      %396 = vst.msk [vmem:[%s199 + $0x50] sm:$0xff] %vm385, %v379
      %397 = vst.msk [vmem:[%s199 + $0x58] sm:$0xff] %vm385, %v380
      %398 = vst.msk [vmem:[%s199 + $0x60] sm:$0xff] %vm385, %v381
      %399 = vst.msk [vmem:[%s199 + $0x68] sm:$0xff] %vm385, %v382
      %400 = vst.msk [vmem:[%s199 + $0x70] sm:$0xff] %vm385, %v383
      %401 = vst.msk [vmem:[%s199 + $0x78] sm:$0xff] %vm385, %v384
      %s402 = smul.u32 16, %s15
      %p403 = scmp.lt.s32.totalorder %s402, 63
      %s404 = scalar_select %p403, %s402, 63
      %s405 = smul.addr %s404, 8
      %s406 = scalar_lea.vmem %s4, %s405
      // Predicated region
      $region37: #{decoder_forward.3} parent=35 // pred_check
        %p407 = pneg %p122
      $region38: #{decoder_forward.3} parent=35 // pred_check_branch
        %409 = sbr.rel (%p407) target = $region40
      $region39: #{decoder_forward.3} parent=35 // pred_region
        %s410 = smul.u32 16, %s15
      $region40: #{decoder_forward.3} parent=35 // pred_fallthru
        _
    $region36: #{decoder_forward.3} parent=5 // pred_fallthru
      _
    %p411 = scmp.le.s32.totalorder 2, %s10
    // Predicated region
    $region41: #{decoder_forward.3} parent=5 // pred_check
      %p412 = pneg %p411
    $region42: #{decoder_forward.3} parent=5 // pred_check_branch
      %414 = sbr.rel (%p412) target = $region44
    $region43: #{decoder_forward.3} parent=5 // pred_region
      %s415 = ssub.s32 %s10, 2
      // Predicated region
      $region45: #{decoder_forward.3} parent=43 // pred_check
        %p416 = pneg %p128
      $region46: #{decoder_forward.3} parent=43 // pred_check_branch
        %418 = sbr.rel (%p416) target = $region48
      $region47: #{decoder_forward.3} parent=43 // pred_region
        %s419 = smul.u32 16, %s16
        %p420 = scmp.lt.s32.totalorder %s419, 63
        %s421 = scalar_select %p420, %s419, 63
        %s422 = smul.addr %s421, 8
        %s423 = scalar_lea.vmem %s4, %s422
      $region48: #{decoder_forward.3} parent=43 // pred_fallthru
        _
    $region44: #{decoder_forward.3} parent=5 // pred_fallthru
      _
  $region6: #{decoder_forward.3} parent=0 // loop_footer
    %s14 = sadd.s32 1, %s10
  $region7: #{decoder_forward.3} parent=0 // loop_footer_branch
    %9 = sbr.rel target = $region3
  $region8: #{decoder_forward.3} parent=0 // loop_exit
    _

</llo_original>
